<compile_context>
chip_gen: v7x
topology: tpu7x:2x2x1
jax: 0.10.0
libtpu: 0.0.40
codegen_flags: <defaults>
</compile_context>

<pallas_src>
import functools

import jax
import jax.numpy as jnp
from jax.experimental import pallas as pl
from jax.experimental.pallas import tpu as pltpu

# Module hyper-parameters (NCF_EMBEDDING_SIZE / NCF_LAYERS are not given in the
# snippet; use the canonical NCF defaults).
EMBEDDING_SIZE = 32
LAYERS = [64, 32, 16]
BN_EPS = 1e-5
DEFAULT_TILE_B = 2048


def _round_up(x, m):
    return (x + m - 1) // m * m


def ncf_kernel(gmf_u_ref, gmf_i_ref, mlp_u_ref, mlp_i_ref,
               w1u_ref, w1i_ref, b1_ref,
               w2_ref, b2_ref,
               w3_ref, b3_ref,
               wo_gmf_ref, wo_mlp_ref, bo_ref,
               out_ref):
    f32 = jnp.float32

    # GMF branch (VPU): elementwise product of user/item GMF embeddings.
    gmf = gmf_u_ref[...].astype(f32) * gmf_i_ref[...].astype(f32)

    # MLP branch.  Layer 1 consumes the (virtual) concat([mlp_u, mlp_i]) via a
    # row-split weight: x1 = mlp_u @ W1[:E] + mlp_i @ W1[E:] + b1.
    h = (jnp.dot(mlp_u_ref[...].astype(f32), w1u_ref[...],
                 preferred_element_type=f32)
         + jnp.dot(mlp_i_ref[...].astype(f32), w1i_ref[...],
                   preferred_element_type=f32)
         + b1_ref[...])
    h = jnp.maximum(h, 0.0)                                   # ReLU
    # Layers 2 & 3.  The eval-mode BatchNorm affine of the *previous* layer is
    # folded into these weights/biases host-side; Dropout is identity in eval.
    h = jnp.maximum(
        jnp.dot(h, w2_ref[...], preferred_element_type=f32) + b2_ref[...], 0.0)
    h = jnp.maximum(
        jnp.dot(h, w3_ref[...], preferred_element_type=f32) + b3_ref[...], 0.0)

    # Output layer on concat([gmf, h]) expressed as VPU multiply + lane (XLU)
    # reductions instead of two degenerate N=1 MXU matmuls.  The last BN's
    # scale/shift are folded into wo_mlp / bo.
    logit = (jnp.sum(gmf * wo_gmf_ref[...], axis=-1, keepdims=True)
             + jnp.sum(h * wo_mlp_ref[...], axis=-1, keepdims=True)
             + bo_ref[...])
    out_ref[...] = jax.nn.sigmoid(logit)


def init_params(key, num_users, num_items,
                embedding_size=EMBEDDING_SIZE, layers=LAYERS):
    """Deterministic init matching NCF._init_weights (normal(0,0.01) embeddings,
    kaiming-normal Linear weights, zero biases, default BatchNorm1d).  Returns
    (kernel_params, reference_params); BN is folded into the kernel params."""
    assert len(layers) == 3, "kernel signature is specialized for 3 MLP layers"
    E = embedding_size
    n_linear = len(layers) + 1
    ks = list(jax.random.split(key, 4 + n_linear))

    # Embedding tables: normal(0, 0.01), stored bf16 (halves HBM gather bytes).
    def emb(k, n):
        return (0.01 * jax.random.normal(k, (n, E), jnp.float32)).astype(jnp.bfloat16)

    ue_gmf, ie_gmf = emb(ks[0], num_users), emb(ks[1], num_items)
    ue_mlp, ie_mlp = emb(ks[2], num_users), emb(ks[3], num_items)

    # MLP Linear layers stored as (in, out); kaiming_normal: std = sqrt(2/fan_in).
    ws, bs = [], []
    in_size = 2 * E
    for idx, layer_size in enumerate(layers):
        std = (2.0 / in_size) ** 0.5
        ws.append(std * jax.random.normal(ks[4 + idx], (in_size, layer_size), jnp.float32))
        bs.append(jnp.zeros((layer_size,), jnp.float32))
        in_size = layer_size

    # Output Linear(layers[-1] + E, 1).
    out_in = layers[-1] + E
    std = (2.0 / out_in) ** 0.5
    w_out = std * jax.random.normal(ks[4 + len(layers)], (out_in, 1), jnp.float32)
    b_out = jnp.zeros((1,), jnp.float32)

    # Eval-mode BatchNorm1d (defaults: gamma=1, beta=0, mean=0, var=1) folded
    # to affine y = x*scale + shift.
    scales, shifts = [], []
    for l in layers:
        gamma = jnp.ones((l,), jnp.float32)
        beta = jnp.zeros((l,), jnp.float32)
        r_mean = jnp.zeros((l,), jnp.float32)
        r_var = jnp.ones((l,), jnp.float32)
        s = gamma / jnp.sqrt(r_var + BN_EPS)
        scales.append(s)
        shifts.append(beta - r_mean * s)

    ref_params = dict(ue_gmf=ue_gmf, ie_gmf=ie_gmf, ue_mlp=ue_mlp, ie_mlp=ie_mlp,
                      ws=ws, bs=bs, scales=scales, shifts=shifts,
                      w_out=w_out, b_out=b_out)

    # --- Fold for the kernel ---------------------------------------------
    kp = dict(ue_gmf=ue_gmf, ie_gmf=ie_gmf, ue_mlp=ue_mlp, ie_mlp=ie_mlp)
    # Layer 1: split W1 rows so the kernel never materializes concat([u, i]).
    kp["w1u"], kp["w1i"] = ws[0][:E, :], ws[0][E:, :]
    kp["b1"] = bs[0][None, :]
    # BN_k (after ReLU_k) folds into the next Linear: W' = s_k[:,None]*W,
    # b' = t_k @ W + b.
    kp["w2"] = scales[0][:, None] * ws[1]
    kp["b2"] = (shifts[0] @ ws[1] + bs[1])[None, :]
    kp["w3"] = scales[1][:, None] * ws[2]
    kp["b3"] = (shifts[1] @ ws[2] + bs[2])[None, :]
    # Output layer split by concat([gmf (E), mlp (L3)]); BN_3 folds into the
    # mlp half and the output bias.
    kp["wo_gmf"] = w_out[:E, 0][None, :]                        # (1, E)
    kp["wo_mlp"] = (scales[2] * w_out[E:, 0])[None, :]          # (1, L3)
    kp["bo"] = (shifts[2] @ w_out[E:, :] + b_out)[None, :]      # (1, 1)
    return kp, ref_params


@functools.partial(jax.jit, static_argnames=("tile_b",))
def ncf_forward(kp, user_indices, item_indices, tile_b=DEFAULT_TILE_B):
    b = user_indices.shape[0]
    # Large batch tile (amortizes ~0.35us/step grid overhead, fills MXU M);
    # multiple of 256, clamped to the (padded) batch so tiny demos still work.
    tb = min(tile_b, _round_up(b, 256))
    bp = _round_up(b, tb)
    pad = bp - b
    u = jnp.pad(user_indices, (0, pad))
    it = jnp.pad(item_indices, (0, pad))

    # Embedding gathers stay in XLA (bf16 tables halve the gather bytes).
    # TODO(synk): fuse the gathers into the kernel via PrefetchScalarGridSpec
    # index arrays + memory_space=pl.ANY DMA gather to remove the remaining
    # HBM round-trip of the gathered rows.
    gmf_u = jnp.take(kp["ue_gmf"], u, axis=0)
    gmf_i = jnp.take(kp["ie_gmf"], it, axis=0)
    mlp_u = jnp.take(kp["ue_mlp"], u, axis=0)
    mlp_i = jnp.take(kp["ie_mlp"], it, axis=0)

    E = gmf_u.shape[1]

    def act_spec(feat):
        # Streaming batch tiles.
        return pl.BlockSpec((tb, feat), lambda i: (i, 0))

    def const_spec(arr):
        # Weights/biases: constant block index -> stay resident across tiles.
        return pl.BlockSpec(arr.shape, lambda i: (0, 0))

    grid = (bp // tb,)
    out = pl.pallas_call(
        ncf_kernel,
        grid=grid,
        out_shape=jax.ShapeDtypeStruct((bp, 1), jnp.float32),
        in_specs=[
            act_spec(E), act_spec(E), act_spec(E), act_spec(E),
            const_spec(kp["w1u"]), const_spec(kp["w1i"]), const_spec(kp["b1"]),
            const_spec(kp["w2"]), const_spec(kp["b2"]),
            const_spec(kp["w3"]), const_spec(kp["b3"]),
            const_spec(kp["wo_gmf"]), const_spec(kp["wo_mlp"]), const_spec(kp["bo"]),
        ],
        out_specs=pl.BlockSpec((tb, 1), lambda i: (i, 0)),
        compiler_params=pltpu.CompilerParams(
            dimension_semantics=("parallel",),   # megacore-shard batch tiles
            vmem_limit_bytes=32 * 1024 * 1024,   # safe headroom on v5e/v6e/v7x
        ),
    )(gmf_u, gmf_i, mlp_u, mlp_i,
      kp["w1u"], kp["w1i"], kp["b1"],
      kp["w2"], kp["b2"], kp["w3"], kp["b3"],
      kp["wo_gmf"], kp["wo_mlp"], kp["bo"])
    return out[:b, 0]


def ncf_reference(p, user_indices, item_indices):
    """Pure-JAX reference of the PyTorch forward (eval mode), unfolded."""
    P = jax.lax.Precision.HIGHEST
    gmf = (jnp.take(p["ue_gmf"], user_indices, axis=0).astype(jnp.float32)
           * jnp.take(p["ie_gmf"], item_indices, axis=0).astype(jnp.float32))
    x = jnp.concatenate(
        [jnp.take(p["ue_mlp"], user_indices, axis=0),
         jnp.take(p["ie_mlp"], item_indices, axis=0)], axis=-1).astype(jnp.float32)
    for w, b, s, t in zip(p["ws"], p["bs"], p["scales"], p["shifts"]):
        x = jnp.maximum(jnp.dot(x, w, precision=P) + b, 0.0) * s + t
        # Dropout(p=0.1) is identity in eval mode.
    concat = jnp.concatenate([gmf, x], axis=-1)
    logit = jnp.dot(concat, p["w_out"], precision=P) + p["b_out"]
    return jax.nn.sigmoid(logit).reshape(-1)


if __name__ == "__main__":
    num_users, num_items = 100, 200
    batch = 8

    key = jax.random.PRNGKey(0)
    k_params, k_u, k_i = jax.random.split(key, 3)
    kernel_params, ref_params = init_params(k_params, num_users, num_items)

    user_indices = jax.random.randint(k_u, (batch,), 0, num_users, dtype=jnp.int32)
    item_indices = jax.random.randint(k_i, (batch,), 0, num_items, dtype=jnp.int32)

    ratings = ncf_forward(kernel_params, user_indices, item_indices)
    jax.block_until_ready(ratings)

    ref = ncf_reference(ref_params, user_indices, item_indices)
    assert ratings.shape == (batch,)
    assert jnp.allclose(ratings, ref, atol=1e-4, rtol=1e-4), (ratings, ref)

    print("KERNEL_OK")
</pallas_src>

<mosaic_0001>
module attributes {stable_mosaic.version = 11 : i64} {
  func.func @ncf_kernel(%arg0: i32, %arg1: memref<256x32xbf16, #tpu.memory_space<vmem>>, %arg2: memref<256x32xbf16, #tpu.memory_space<vmem>>, %arg3: memref<256x32xbf16, #tpu.memory_space<vmem>>, %arg4: memref<256x32xbf16, #tpu.memory_space<vmem>>, %arg5: memref<32x64xf32, #tpu.memory_space<vmem>>, %arg6: memref<32x64xf32, #tpu.memory_space<vmem>>, %arg7: memref<1x64xf32, #tpu.memory_space<vmem>>, %arg8: memref<64x32xf32, #tpu.memory_space<vmem>>, %arg9: memref<1x32xf32, #tpu.memory_space<vmem>>, %arg10: memref<32x16xf32, #tpu.memory_space<vmem>>, %arg11: memref<1x16xf32, #tpu.memory_space<vmem>>, %arg12: memref<1x32xf32, #tpu.memory_space<vmem>>, %arg13: memref<1x16xf32, #tpu.memory_space<vmem>>, %arg14: memref<1x1xf32, #tpu.memory_space<vmem>>, %arg15: memref<256x1xf32, #tpu.memory_space<vmem>>) attributes {dimension_semantics = [#tpu.dimension_semantics<parallel>], iteration_bounds = array<i64: 1>, scalar_prefetch = 0 : i64, scratch_operands = 0 : i64, tpu.core_type = #tpu.core_type<tc>, window_params = [{transform_indices = @transform_0, window_bounds = array<i64: 256, 32>}, {transform_indices = @transform_1, window_bounds = array<i64: 256, 32>}, {transform_indices = @transform_2, window_bounds = array<i64: 256, 32>}, {transform_indices = @transform_3, window_bounds = array<i64: 256, 32>}, {pipeline_mode = #tpu.pipeline_mode<synchronous>, transform_indices = @transform_4, window_bounds = array<i64: 32, 64>}, {pipeline_mode = #tpu.pipeline_mode<synchronous>, transform_indices = @transform_5, window_bounds = array<i64: 32, 64>}, {pipeline_mode = #tpu.pipeline_mode<synchronous>, transform_indices = @transform_6, window_bounds = array<i64: 1, 64>}, {pipeline_mode = #tpu.pipeline_mode<synchronous>, transform_indices = @transform_7, window_bounds = array<i64: 64, 32>}, {pipeline_mode = #tpu.pipeline_mode<synchronous>, transform_indices = @transform_8, window_bounds = array<i64: 1, 32>}, {pipeline_mode = #tpu.pipeline_mode<synchronous>, transform_indices = @transform_9, window_bounds = array<i64: 32, 16>}, {pipeline_mode = #tpu.pipeline_mode<synchronous>, transform_indices = @transform_10, window_bounds = array<i64: 1, 16>}, {pipeline_mode = #tpu.pipeline_mode<synchronous>, transform_indices = @transform_11, window_bounds = array<i64: 1, 32>}, {pipeline_mode = #tpu.pipeline_mode<synchronous>, transform_indices = @transform_12, window_bounds = array<i64: 1, 16>}, {pipeline_mode = #tpu.pipeline_mode<synchronous>, transform_indices = @transform_13, window_bounds = array<i64: 1, 1>}, {transform_indices = @transform_14, window_bounds = array<i64: 256, 1>}]} {
    %c0 = arith.constant 0 : index
    %c0_0 = arith.constant 0 : index
    %0 = vector.load %arg1[%c0, %c0_0] : memref<256x32xbf16, #tpu.memory_space<vmem>>, vector<256x32xbf16>
    %1 = arith.extf %0 : vector<256x32xbf16> to vector<256x32xf32>
    %c0_1 = arith.constant 0 : index
    %c0_2 = arith.constant 0 : index
    %2 = vector.load %arg2[%c0_1, %c0_2] : memref<256x32xbf16, #tpu.memory_space<vmem>>, vector<256x32xbf16>
    %3 = arith.extf %2 : vector<256x32xbf16> to vector<256x32xf32>
    %4 = arith.mulf %1, %3 : vector<256x32xf32>
    %c0_3 = arith.constant 0 : index
    %c0_4 = arith.constant 0 : index
    %5 = vector.load %arg3[%c0_3, %c0_4] : memref<256x32xbf16, #tpu.memory_space<vmem>>, vector<256x32xbf16>
    %6 = arith.extf %5 : vector<256x32xbf16> to vector<256x32xf32>
    %c0_5 = arith.constant 0 : index
    %c0_6 = arith.constant 0 : index
    %7 = vector.load %arg5[%c0_5, %c0_6] : memref<32x64xf32, #tpu.memory_space<vmem>>, vector<32x64xf32>
    %cst = arith.constant dense<0.000000e+00> : vector<256x64xf32>
    %8 = tpu.matmul %6, %7, %cst {dimension_numbers = #tpu.dot_dimension_numbers<[1], [0], [0], [1], [0, 0, 1, 1], [], []>} : vector<256x32xf32>, vector<32x64xf32>, vector<256x64xf32> -> vector<256x64xf32>
    %c0_7 = arith.constant 0 : index
    %c0_8 = arith.constant 0 : index
    %9 = vector.load %arg4[%c0_7, %c0_8] : memref<256x32xbf16, #tpu.memory_space<vmem>>, vector<256x32xbf16>
    %10 = arith.extf %9 : vector<256x32xbf16> to vector<256x32xf32>
    %c0_9 = arith.constant 0 : index
    %c0_10 = arith.constant 0 : index
    %11 = vector.load %arg6[%c0_9, %c0_10] : memref<32x64xf32, #tpu.memory_space<vmem>>, vector<32x64xf32>
    %cst_11 = arith.constant dense<0.000000e+00> : vector<256x64xf32>
    %12 = tpu.matmul %10, %11, %cst_11 {dimension_numbers = #tpu.dot_dimension_numbers<[1], [0], [0], [1], [0, 0, 1, 1], [], []>} : vector<256x32xf32>, vector<32x64xf32>, vector<256x64xf32> -> vector<256x64xf32>
    %13 = arith.addf %8, %12 : vector<256x64xf32>
    %c0_12 = arith.constant 0 : index
    %c0_13 = arith.constant 0 : index
    %14 = vector.load %arg7[%c0_12, %c0_13] : memref<1x64xf32, #tpu.memory_space<vmem>>, vector<1x64xf32>
    %15 = vector.broadcast %14 : vector<1x64xf32> to vector<256x64xf32>
    %16 = arith.addf %13, %15 : vector<256x64xf32>
    %cst_14 = arith.constant 0.000000e+00 : f32
    %17 = vector.broadcast %cst_14 : f32 to vector<256x64xf32>
    %18 = arith.maximumf %16, %17 : vector<256x64xf32>
    %c0_15 = arith.constant 0 : index
    %c0_16 = arith.constant 0 : index
    %19 = vector.load %arg8[%c0_15, %c0_16] : memref<64x32xf32, #tpu.memory_space<vmem>>, vector<64x32xf32>
    %cst_17 = arith.constant dense<0.000000e+00> : vector<256x32xf32>
    %20 = tpu.matmul %18, %19, %cst_17 {dimension_numbers = #tpu.dot_dimension_numbers<[1], [0], [0], [1], [0, 0, 1, 1], [], []>} : vector<256x64xf32>, vector<64x32xf32>, vector<256x32xf32> -> vector<256x32xf32>
    %c0_18 = arith.constant 0 : index
    %c0_19 = arith.constant 0 : index
    %21 = vector.load %arg9[%c0_18, %c0_19] : memref<1x32xf32, #tpu.memory_space<vmem>>, vector<1x32xf32>
    %22 = vector.broadcast %21 : vector<1x32xf32> to vector<256x32xf32>
    %23 = arith.addf %20, %22 : vector<256x32xf32>
    %cst_20 = arith.constant 0.000000e+00 : f32
    %24 = vector.broadcast %cst_20 : f32 to vector<256x32xf32>
    %25 = arith.maximumf %23, %24 : vector<256x32xf32>
    %c0_21 = arith.constant 0 : index
    %c0_22 = arith.constant 0 : index
    %26 = vector.load %arg10[%c0_21, %c0_22] : memref<32x16xf32, #tpu.memory_space<vmem>>, vector<32x16xf32>
    %cst_23 = arith.constant dense<0.000000e+00> : vector<256x16xf32>
    %27 = tpu.matmul %25, %26, %cst_23 {dimension_numbers = #tpu.dot_dimension_numbers<[1], [0], [0], [1], [0, 0, 1, 1], [], []>} : vector<256x32xf32>, vector<32x16xf32>, vector<256x16xf32> -> vector<256x16xf32>
    %c0_24 = arith.constant 0 : index
    %c0_25 = arith.constant 0 : index
    %28 = vector.load %arg11[%c0_24, %c0_25] : memref<1x16xf32, #tpu.memory_space<vmem>>, vector<1x16xf32>
    %29 = vector.broadcast %28 : vector<1x16xf32> to vector<256x16xf32>
    %30 = arith.addf %27, %29 : vector<256x16xf32>
    %cst_26 = arith.constant 0.000000e+00 : f32
    %31 = vector.broadcast %cst_26 : f32 to vector<256x16xf32>
    %32 = arith.maximumf %30, %31 : vector<256x16xf32>
    %c0_27 = arith.constant 0 : index
    %c0_28 = arith.constant 0 : index
    %33 = vector.load %arg12[%c0_27, %c0_28] : memref<1x32xf32, #tpu.memory_space<vmem>>, vector<1x32xf32>
    %34 = vector.broadcast %33 : vector<1x32xf32> to vector<256x32xf32>
    %35 = arith.mulf %4, %34 : vector<256x32xf32>
    %cst_29 = arith.constant dense<0.000000e+00> : vector<256xf32>
    %36 = vector.multi_reduction <add>, %35, %cst_29 [1] : vector<256x32xf32> to vector<256xf32>
    %37 = vector.shape_cast %36 : vector<256xf32> to vector<256x1xf32>
    %c0_30 = arith.constant 0 : index
    %c0_31 = arith.constant 0 : index
    %38 = vector.load %arg13[%c0_30, %c0_31] : memref<1x16xf32, #tpu.memory_space<vmem>>, vector<1x16xf32>
    %39 = vector.broadcast %38 : vector<1x16xf32> to vector<256x16xf32>
    %40 = arith.mulf %32, %39 : vector<256x16xf32>
    %cst_32 = arith.constant dense<0.000000e+00> : vector<256xf32>
    %41 = vector.multi_reduction <add>, %40, %cst_32 [1] : vector<256x16xf32> to vector<256xf32>
    %42 = vector.shape_cast %41 : vector<256xf32> to vector<256x1xf32>
    %43 = arith.addf %37, %42 : vector<256x1xf32>
    %c0_33 = arith.constant 0 : index
    %c0_34 = arith.constant 0 : index
    %44 = vector.load %arg14[%c0_33, %c0_34] : memref<1x1xf32, #tpu.memory_space<vmem>>, vector<1x1xf32>
    %45 = vector.broadcast %44 : vector<1x1xf32> to vector<256x1xf32>
    %46 = arith.addf %43, %45 : vector<256x1xf32>
    %47 = arith.negf %46 : vector<256x1xf32>
    %48 = math.exp %47 : vector<256x1xf32>
    %cst_35 = arith.constant 1.000000e+00 : f32
    %49 = vector.broadcast %cst_35 : f32 to vector<256x1xf32>
    %50 = arith.addf %49, %48 : vector<256x1xf32>
    %51 = arith.divf %49, %50 : vector<256x1xf32>
    %c0_36 = arith.constant 0 : index
    %c0_37 = arith.constant 0 : index
    %52 = vector.load %arg15[%c0_36, %c0_37] : memref<256x1xf32, #tpu.memory_space<vmem>>, vector<256x1xf32>
    tpu.vector_store %arg15[%c0_36, %c0_37], %51 {strides = array<i32>} : memref<256x1xf32, #tpu.memory_space<vmem>>, vector<256x1xf32>,
    return
  }
  func.func @transform_0(%arg0: i32) -> (i32, i32) {
    %c0_i32 = arith.constant 0 : i32
    %c0_i32_0 = arith.constant 0 : i32
    return %arg0, %c0_i32 : i32, i32
  }
  func.func @transform_1(%arg0: i32) -> (i32, i32) {
    %c0_i32 = arith.constant 0 : i32
    %c0_i32_0 = arith.constant 0 : i32
    return %arg0, %c0_i32 : i32, i32
  }
  func.func @transform_2(%arg0: i32) -> (i32, i32) {
    %c0_i32 = arith.constant 0 : i32
    %c0_i32_0 = arith.constant 0 : i32
    return %arg0, %c0_i32 : i32, i32
  }
  func.func @transform_3(%arg0: i32) -> (i32, i32) {
    %c0_i32 = arith.constant 0 : i32
    %c0_i32_0 = arith.constant 0 : i32
    return %arg0, %c0_i32 : i32, i32
  }
  func.func @transform_4(%arg0: i32) -> (i32, i32) {
    %c0_i32 = arith.constant 0 : i32
    %c0_i32_0 = arith.constant 0 : i32
    %c0_i32_1 = arith.constant 0 : i32
    return %c0_i32, %c0_i32_0 : i32, i32
  }
  func.func @transform_5(%arg0: i32) -> (i32, i32) {
    %c0_i32 = arith.constant 0 : i32
    %c0_i32_0 = arith.constant 0 : i32
    %c0_i32_1 = arith.constant 0 : i32
    return %c0_i32, %c0_i32_0 : i32, i32
  }
  func.func @transform_6(%arg0: i32) -> (i32, i32) {
    %c0_i32 = arith.constant 0 : i32
    %c0_i32_0 = arith.constant 0 : i32
    %c0_i32_1 = arith.constant 0 : i32
    return %c0_i32, %c0_i32_0 : i32, i32
  }
  func.func @transform_7(%arg0: i32) -> (i32, i32) {
    %c0_i32 = arith.constant 0 : i32
    %c0_i32_0 = arith.constant 0 : i32
    %c0_i32_1 = arith.constant 0 : i32
    return %c0_i32, %c0_i32_0 : i32, i32
  }
  func.func @transform_8(%arg0: i32) -> (i32, i32) {
    %c0_i32 = arith.constant 0 : i32
    %c0_i32_0 = arith.constant 0 : i32
    %c0_i32_1 = arith.constant 0 : i32
    return %c0_i32, %c0_i32_0 : i32, i32
  }
  func.func @transform_9(%arg0: i32) -> (i32, i32) {
    %c0_i32 = arith.constant 0 : i32
    %c0_i32_0 = arith.constant 0 : i32
    %c0_i32_1 = arith.constant 0 : i32
    return %c0_i32, %c0_i32_0 : i32, i32
  }
  func.func @transform_10(%arg0: i32) -> (i32, i32) {
    %c0_i32 = arith.constant 0 : i32
    %c0_i32_0 = arith.constant 0 : i32
    %c0_i32_1 = arith.constant 0 : i32
    return %c0_i32, %c0_i32_0 : i32, i32
  }
  func.func @transform_11(%arg0: i32) -> (i32, i32) {
    %c0_i32 = arith.constant 0 : i32
    %c0_i32_0 = arith.constant 0 : i32
    %c0_i32_1 = arith.constant 0 : i32
    return %c0_i32, %c0_i32_0 : i32, i32
  }
  func.func @transform_12(%arg0: i32) -> (i32, i32) {
    %c0_i32 = arith.constant 0 : i32
    %c0_i32_0 = arith.constant 0 : i32
    %c0_i32_1 = arith.constant 0 : i32
    return %c0_i32, %c0_i32_0 : i32, i32
  }
  func.func @transform_13(%arg0: i32) -> (i32, i32) {
    %c0_i32 = arith.constant 0 : i32
    %c0_i32_0 = arith.constant 0 : i32
    %c0_i32_1 = arith.constant 0 : i32
    return %c0_i32, %c0_i32_0 : i32, i32
  }
  func.func @transform_14(%arg0: i32) -> (i32, i32) {
    %c0_i32 = arith.constant 0 : i32
    %c0_i32_0 = arith.constant 0 : i32
    return %arg0, %c0_i32 : i32, i32
  }
}

</mosaic_0001>

<llo_original>
// kernel: ncf_forward.1
$region0: #{ncf_forward.1}
  #allocation0 [shape = 'u32[]', space=smem, size = 0x4, offset = 0x4, fixed_abs, tag = 'smem constant byte address 0x4 - core index']
  #allocation1 [shape = 'u32[144,128]{1,0:T(1,128)}', space=vmem, size = 0x12000, scoped, tag = 'internal scratch']
  #allocation2 [shape = 'f32[1,1]{1,0:T(1,128)S(1)}', space=vmem, size = 0x200, scoped, tag = 'scoped memory for ncf_forward.1']
  %s0 = inlined_call_operand.vmem [shape: bf16[256,32], index: 0, kind: input, shape index: {}]
  %s1 = inlined_call_operand.vmem [shape: bf16[256,32], index: 1, kind: input, shape index: {}]
  %s2 = inlined_call_operand.vmem [shape: bf16[256,32], index: 2, kind: input, shape index: {}]
  %s3 = inlined_call_operand.vmem [shape: bf16[256,32], index: 3, kind: input, shape index: {}]
  %s4 = inlined_call_operand.vmem [shape: f32[32,64], index: 4, kind: input, shape index: {}]
  %s5 = inlined_call_operand.vmem [shape: f32[32,64], index: 5, kind: input, shape index: {}]
  %s6 = inlined_call_operand.vmem [shape: f32[1,64], index: 6, kind: input, shape index: {}]
  %s7 = inlined_call_operand.vmem [shape: f32[64,32], index: 7, kind: input, shape index: {}]
  %s8 = inlined_call_operand.vmem [shape: f32[1,32], index: 8, kind: input, shape index: {}]
  %s9 = inlined_call_operand.vmem [shape: f32[32,16], index: 9, kind: input, shape index: {}]
  %s10 = inlined_call_operand.vmem [shape: f32[1,16], index: 10, kind: input, shape index: {}]
  %s11 = inlined_call_operand.vmem [shape: f32[1,32], index: 11, kind: input, shape index: {}]
  %s12 = inlined_call_operand.vmem [shape: f32[1,16], index: 12, kind: input, shape index: {}]
  %s13 = inlined_call_operand.<no memory space> [shape: f32[1,1], index: 13, kind: input, shape index: {}]
  %s14 = inlined_call_operand.vmem [shape: f32[256,1], index: 14, kind: output, shape index: {}]
  %s15 = sld [smem:[#allocation0]]
  $region66: #{ncf_forward.1} parent=0
    _
  %s17 = ssub.s32 1, %s15
  %s18 = scalar_select 0, %s17, %s15
  %v19 = vstv %s13
  %20 = vst [vmem:[#allocation2] sm:$0x1] %v19
  // Predicated region
  $region2: #{ncf_forward.1} parent=0 // pred_check
    _
  $region3: #{ncf_forward.1} parent=0 // pred_check_branch
    %22 = sbr.rel (0) target = $region5
  $region4: #{ncf_forward.1} parent=0 // pred_region
    _
  $region5: #{ncf_forward.1} parent=0 // pred_fallthru
    _
  // Predicated region
  $region6: #{ncf_forward.1} parent=0 // pred_check
    _
  $region7: #{ncf_forward.1} parent=0 // pred_check_branch
    %24 = sbr.rel (0) target = $region9
  $region8: #{ncf_forward.1} parent=0 // pred_region
    _
  $region9: #{ncf_forward.1} parent=0 // pred_fallthru
    _
  // Predicated region
  $region10: #{ncf_forward.1} parent=0 // pred_check
    _
  $region11: #{ncf_forward.1} parent=0 // pred_check_branch
    %26 = sbr.rel (0) target = $region13
  $region12: #{ncf_forward.1} parent=0 // pred_region
    _
  $region13: #{ncf_forward.1} parent=0 // pred_fallthru
    _
  // Predicated region
  $region14: #{ncf_forward.1} parent=0 // pred_check
    _
  $region15: #{ncf_forward.1} parent=0 // pred_check_branch
    %28 = sbr.rel (0) target = $region17
  $region16: #{ncf_forward.1} parent=0 // pred_region
    _
  $region17: #{ncf_forward.1} parent=0 // pred_fallthru
    _
  // Predicated region
  $region18: #{ncf_forward.1} parent=0 // pred_check
    _
  $region19: #{ncf_forward.1} parent=0 // pred_check_branch
    %30 = sbr.rel (0) target = $region21
  $region20: #{ncf_forward.1} parent=0 // pred_region
    _
  $region21: #{ncf_forward.1} parent=0 // pred_fallthru
    _
  // Predicated region
  $region22: #{ncf_forward.1} parent=0 // pred_check
    _
  $region23: #{ncf_forward.1} parent=0 // pred_check_branch
    %32 = sbr.rel (0) target = $region25
  $region24: #{ncf_forward.1} parent=0 // pred_region
    _
  $region25: #{ncf_forward.1} parent=0 // pred_fallthru
    _
  // Predicated region
  $region26: #{ncf_forward.1} parent=0 // pred_check
    _
  $region27: #{ncf_forward.1} parent=0 // pred_check_branch
    %34 = sbr.rel (0) target = $region29
  $region28: #{ncf_forward.1} parent=0 // pred_region
    _
  $region29: #{ncf_forward.1} parent=0 // pred_fallthru
    _
  // Predicated region
  $region30: #{ncf_forward.1} parent=0 // pred_check
    _
  $region31: #{ncf_forward.1} parent=0 // pred_check_branch
    %36 = sbr.rel (0) target = $region33
  $region32: #{ncf_forward.1} parent=0 // pred_region
    _
  $region33: #{ncf_forward.1} parent=0 // pred_fallthru
    _
  // Predicated region
  $region34: #{ncf_forward.1} parent=0 // pred_check
    _
  $region35: #{ncf_forward.1} parent=0 // pred_check_branch
    %38 = sbr.rel (0) target = $region37
  $region36: #{ncf_forward.1} parent=0 // pred_region
    _
  $region37: #{ncf_forward.1} parent=0 // pred_fallthru
    _
  // Predicated region
  $region38: #{ncf_forward.1} parent=0 // pred_check
    _
  $region39: #{ncf_forward.1} parent=0 // pred_check_branch
    %40 = sbr.rel (0) target = $region41
  $region40: #{ncf_forward.1} parent=0 // pred_region
    _
  $region41: #{ncf_forward.1} parent=0 // pred_fallthru
    _
  // Predicated region
  $region42: #{ncf_forward.1} parent=0 // pred_check
    _
  $region43: #{ncf_forward.1} parent=0 // pred_check_branch
    %42 = sbr.rel (0) target = $region45
  $region44: #{ncf_forward.1} parent=0 // pred_region
    _
  $region45: #{ncf_forward.1} parent=0 // pred_fallthru
    _
  // Predicated region
  $region46: #{ncf_forward.1} parent=0 // pred_check
    _
  $region47: #{ncf_forward.1} parent=0 // pred_check_branch
    %44 = sbr.rel (0) target = $region49
  $region48: #{ncf_forward.1} parent=0 // pred_region
    _
  $region49: #{ncf_forward.1} parent=0 // pred_fallthru
    _
  // Predicated region
  $region50: #{ncf_forward.1} parent=0 // pred_check
    _
  $region51: #{ncf_forward.1} parent=0 // pred_check_branch
    %46 = sbr.rel (0) target = $region53
  $region52: #{ncf_forward.1} parent=0 // pred_region
    _
  $region53: #{ncf_forward.1} parent=0 // pred_fallthru
    _
  // Predicated region
  $region54: #{ncf_forward.1} parent=0 // pred_check
    _
  $region55: #{ncf_forward.1} parent=0 // pred_check_branch
    %48 = sbr.rel (0) target = $region57
  $region56: #{ncf_forward.1} parent=0 // pred_region
    _
  $region57: #{ncf_forward.1} parent=0 // pred_fallthru
    _
  %v49 = vld [vmem:[%s0] sm:$0xf]
  %v50 = vld [vmem:[%s0 + $0x4] sm:$0xf]
  %v51 = vld [vmem:[%s0 + $0x8] sm:$0xf]
  %v52 = vld [vmem:[%s0 + $0xc] sm:$0xf]
  %v53 = vld [vmem:[%s0 + $0x10] sm:$0xf]
  %v54 = vld [vmem:[%s0 + $0x14] sm:$0xf]
  %v55 = vld [vmem:[%s0 + $0x18] sm:$0xf]
  %v56 = vld [vmem:[%s0 + $0x1c] sm:$0xf]
  %v57 = vld [vmem:[%s0 + $0x20] sm:$0xf]
  %v58 = vld [vmem:[%s0 + $0x24] sm:$0xf]
  %v59 = vld [vmem:[%s0 + $0x28] sm:$0xf]
  %v60 = vld [vmem:[%s0 + $0x2c] sm:$0xf]
  %v61 = vld [vmem:[%s0 + $0x30] sm:$0xf]
  %v62 = vld [vmem:[%s0 + $0x34] sm:$0xf]
  %v63 = vld [vmem:[%s0 + $0x38] sm:$0xf]
  %v64 = vld [vmem:[%s0 + $0x3c] sm:$0xf]
  %v65 = vld [vmem:[%s0 + $0x40] sm:$0xf]
  %v66 = vld [vmem:[%s0 + $0x44] sm:$0xf]
  %v67 = vld [vmem:[%s0 + $0x48] sm:$0xf]
  %v68 = vld [vmem:[%s0 + $0x4c] sm:$0xf]
  %v69 = vld [vmem:[%s0 + $0x50] sm:$0xf]
  %v70 = vld [vmem:[%s0 + $0x54] sm:$0xf]
  %v71 = vld [vmem:[%s0 + $0x58] sm:$0xf]
  %v72 = vld [vmem:[%s0 + $0x5c] sm:$0xf]
  %v73 = vld [vmem:[%s0 + $0x60] sm:$0xf]
  %v74 = vld [vmem:[%s0 + $0x64] sm:$0xf]
  %v75 = vld [vmem:[%s0 + $0x68] sm:$0xf]
  %v76 = vld [vmem:[%s0 + $0x6c] sm:$0xf]
  %v77 = vld [vmem:[%s0 + $0x70] sm:$0xf]
  %v78 = vld [vmem:[%s0 + $0x74] sm:$0xf]
  %v79 = vld [vmem:[%s0 + $0x78] sm:$0xf]
  %v80 = vld [vmem:[%s0 + $0x7c] sm:$0xf]
  %v81 = vunpack.c.l.bf16 %v49
  %v82 = vunpack.c.l.bf16 %v50
  %v83 = vunpack.c.l.bf16 %v51
  %v84 = vunpack.c.l.bf16 %v52
  %v85 = vunpack.c.l.bf16 %v53
  %v86 = vunpack.c.l.bf16 %v54
  %v87 = vunpack.c.l.bf16 %v55
  %v88 = vunpack.c.l.bf16 %v56
  %v89 = vunpack.c.l.bf16 %v57
  %v90 = vunpack.c.l.bf16 %v58
  %v91 = vunpack.c.l.bf16 %v59
  %v92 = vunpack.c.l.bf16 %v60
  %v93 = vunpack.c.l.bf16 %v61
  %v94 = vunpack.c.l.bf16 %v62
  %v95 = vunpack.c.l.bf16 %v63
  %v96 = vunpack.c.l.bf16 %v64
  %v97 = vunpack.c.l.bf16 %v65
  %v98 = vunpack.c.l.bf16 %v66
  %v99 = vunpack.c.l.bf16 %v67
  %v100 = vunpack.c.l.bf16 %v68
  %v101 = vunpack.c.l.bf16 %v69
  %v102 = vunpack.c.l.bf16 %v70
  %v103 = vunpack.c.l.bf16 %v71
  %v104 = vunpack.c.l.bf16 %v72
  %v105 = vunpack.c.l.bf16 %v73
  %v106 = vunpack.c.l.bf16 %v74
  %v107 = vunpack.c.l.bf16 %v75
  %v108 = vunpack.c.l.bf16 %v76
  %v109 = vunpack.c.l.bf16 %v77
  %v110 = vunpack.c.l.bf16 %v78
  %v111 = vunpack.c.l.bf16 %v79
  %v112 = vunpack.c.l.bf16 %v80
  %v113 = vld [vmem:[%s1] sm:$0xf]
  %v114 = vld [vmem:[%s1 + $0x4] sm:$0xf]
  %v115 = vld [vmem:[%s1 + $0x8] sm:$0xf]
  %v116 = vld [vmem:[%s1 + $0xc] sm:$0xf]
  %v117 = vld [vmem:[%s1 + $0x10] sm:$0xf]
  %v118 = vld [vmem:[%s1 + $0x14] sm:$0xf]
  %v119 = vld [vmem:[%s1 + $0x18] sm:$0xf]
  %v120 = vld [vmem:[%s1 + $0x1c] sm:$0xf]
  %v121 = vld [vmem:[%s1 + $0x20] sm:$0xf]
  %v122 = vld [vmem:[%s1 + $0x24] sm:$0xf]
  %v123 = vld [vmem:[%s1 + $0x28] sm:$0xf]
  %v124 = vld [vmem:[%s1 + $0x2c] sm:$0xf]
  %v125 = vld [vmem:[%s1 + $0x30] sm:$0xf]
  %v126 = vld [vmem:[%s1 + $0x34] sm:$0xf]
  %v127 = vld [vmem:[%s1 + $0x38] sm:$0xf]
  %v128 = vld [vmem:[%s1 + $0x3c] sm:$0xf]
  %v129 = vld [vmem:[%s1 + $0x40] sm:$0xf]
  %v130 = vld [vmem:[%s1 + $0x44] sm:$0xf]
  %v131 = vld [vmem:[%s1 + $0x48] sm:$0xf]
  %v132 = vld [vmem:[%s1 + $0x4c] sm:$0xf]
  %v133 = vld [vmem:[%s1 + $0x50] sm:$0xf]
  %v134 = vld [vmem:[%s1 + $0x54] sm:$0xf]
  %v135 = vld [vmem:[%s1 + $0x58] sm:$0xf]
  %v136 = vld [vmem:[%s1 + $0x5c] sm:$0xf]
  %v137 = vld [vmem:[%s1 + $0x60] sm:$0xf]
  %v138 = vld [vmem:[%s1 + $0x64] sm:$0xf]
  %v139 = vld [vmem:[%s1 + $0x68] sm:$0xf]
  %v140 = vld [vmem:[%s1 + $0x6c] sm:$0xf]
  %v141 = vld [vmem:[%s1 + $0x70] sm:$0xf]
  %v142 = vld [vmem:[%s1 + $0x74] sm:$0xf]
  %v143 = vld [vmem:[%s1 + $0x78] sm:$0xf]
  %v144 = vld [vmem:[%s1 + $0x7c] sm:$0xf]
  %v145 = vunpack.c.l.bf16 %v113
  %v146 = vunpack.c.l.bf16 %v114
  %v147 = vunpack.c.l.bf16 %v115
  %v148 = vunpack.c.l.bf16 %v116
  %v149 = vunpack.c.l.bf16 %v117
  %v150 = vunpack.c.l.bf16 %v118
  %v151 = vunpack.c.l.bf16 %v119
  %v152 = vunpack.c.l.bf16 %v120
  %v153 = vunpack.c.l.bf16 %v121
  %v154 = vunpack.c.l.bf16 %v122
  %v155 = vunpack.c.l.bf16 %v123
  %v156 = vunpack.c.l.bf16 %v124
  %v157 = vunpack.c.l.bf16 %v125
  %v158 = vunpack.c.l.bf16 %v126
  %v159 = vunpack.c.l.bf16 %v127
  %v160 = vunpack.c.l.bf16 %v128
  %v161 = vunpack.c.l.bf16 %v129
  %v162 = vunpack.c.l.bf16 %v130
  %v163 = vunpack.c.l.bf16 %v131
  %v164 = vunpack.c.l.bf16 %v132
  %v165 = vunpack.c.l.bf16 %v133
  %v166 = vunpack.c.l.bf16 %v134
  %v167 = vunpack.c.l.bf16 %v135
  %v168 = vunpack.c.l.bf16 %v136
  %v169 = vunpack.c.l.bf16 %v137
  %v170 = vunpack.c.l.bf16 %v138
  %v171 = vunpack.c.l.bf16 %v139
  %v172 = vunpack.c.l.bf16 %v140
  %v173 = vunpack.c.l.bf16 %v141
  %v174 = vunpack.c.l.bf16 %v142
  %v175 = vunpack.c.l.bf16 %v143
  %v176 = vunpack.c.l.bf16 %v144
  %v177 = vmul.f32 %v81, %v145
  %v178 = vmul.f32 %v82, %v146
  %v179 = vmul.f32 %v83, %v147
  %v180 = vmul.f32 %v84, %v148
  %v181 = vmul.f32 %v85, %v149
  %v182 = vmul.f32 %v86, %v150
  %v183 = vmul.f32 %v87, %v151
  %v184 = vmul.f32 %v88, %v152
  %v185 = vmul.f32 %v89, %v153
  %v186 = vmul.f32 %v90, %v154
  %v187 = vmul.f32 %v91, %v155
  %v188 = vmul.f32 %v92, %v156
  %v189 = vmul.f32 %v93, %v157
  %v190 = vmul.f32 %v94, %v158
  %v191 = vmul.f32 %v95, %v159
  %v192 = vmul.f32 %v96, %v160
  %v193 = vmul.f32 %v97, %v161
  %v194 = vmul.f32 %v98, %v162
  %v195 = vmul.f32 %v99, %v163
  %v196 = vmul.f32 %v100, %v164
  %v197 = vmul.f32 %v101, %v165
  %v198 = vmul.f32 %v102, %v166
  %v199 = vmul.f32 %v103, %v167
  %v200 = vmul.f32 %v104, %v168
  %v201 = vmul.f32 %v105, %v169
  %v202 = vmul.f32 %v106, %v170
  %v203 = vmul.f32 %v107, %v171
  %v204 = vmul.f32 %v108, %v172
  %v205 = vmul.f32 %v109, %v173
  %v206 = vmul.f32 %v110, %v174
  %v207 = vmul.f32 %v111, %v175
  %v208 = vmul.f32 %v112, %v176
  %v209 = vld [vmem:[%s2] sm:$0xf]
  %v210 = vld [vmem:[%s2 + $0x4] sm:$0xf]
  %v211 = vld [vmem:[%s2 + $0x8] sm:$0xf]
  %v212 = vld [vmem:[%s2 + $0xc] sm:$0xf]
  %v213 = vld [vmem:[%s2 + $0x10] sm:$0xf]
  %v214 = vld [vmem:[%s2 + $0x14] sm:$0xf]
  %v215 = vld [vmem:[%s2 + $0x18] sm:$0xf]
  %v216 = vld [vmem:[%s2 + $0x1c] sm:$0xf]
  %v217 = vld [vmem:[%s2 + $0x20] sm:$0xf]
  %v218 = vld [vmem:[%s2 + $0x24] sm:$0xf]
  %v219 = vld [vmem:[%s2 + $0x28] sm:$0xf]
  %v220 = vld [vmem:[%s2 + $0x2c] sm:$0xf]
  %v221 = vld [vmem:[%s2 + $0x30] sm:$0xf]
  %v222 = vld [vmem:[%s2 + $0x34] sm:$0xf]
  %v223 = vld [vmem:[%s2 + $0x38] sm:$0xf]
  %v224 = vld [vmem:[%s2 + $0x3c] sm:$0xf]
  %v225 = vld [vmem:[%s2 + $0x40] sm:$0xf]
  %v226 = vld [vmem:[%s2 + $0x44] sm:$0xf]
  %v227 = vld [vmem:[%s2 + $0x48] sm:$0xf]
  %v228 = vld [vmem:[%s2 + $0x4c] sm:$0xf]
  %v229 = vld [vmem:[%s2 + $0x50] sm:$0xf]
  %v230 = vld [vmem:[%s2 + $0x54] sm:$0xf]
  %v231 = vld [vmem:[%s2 + $0x58] sm:$0xf]
  %v232 = vld [vmem:[%s2 + $0x5c] sm:$0xf]
  %v233 = vld [vmem:[%s2 + $0x60] sm:$0xf]
  %v234 = vld [vmem:[%s2 + $0x64] sm:$0xf]
  %v235 = vld [vmem:[%s2 + $0x68] sm:$0xf]
  %v236 = vld [vmem:[%s2 + $0x6c] sm:$0xf]
  %v237 = vld [vmem:[%s2 + $0x70] sm:$0xf]
  %v238 = vld [vmem:[%s2 + $0x74] sm:$0xf]
  %v239 = vld [vmem:[%s2 + $0x78] sm:$0xf]
  %v240 = vld [vmem:[%s2 + $0x7c] sm:$0xf]
  %v241 = vunpack.c.l.bf16 %v209
  %v242 = vunpack.c.l.bf16 %v210
  %v243 = vunpack.c.l.bf16 %v211
  %v244 = vunpack.c.l.bf16 %v212
  %v245 = vunpack.c.l.bf16 %v213
  %v246 = vunpack.c.l.bf16 %v214
  %v247 = vunpack.c.l.bf16 %v215
  %v248 = vunpack.c.l.bf16 %v216
  %v249 = vunpack.c.l.bf16 %v217
  %v250 = vunpack.c.l.bf16 %v218
  %v251 = vunpack.c.l.bf16 %v219
  %v252 = vunpack.c.l.bf16 %v220
  %v253 = vunpack.c.l.bf16 %v221
  %v254 = vunpack.c.l.bf16 %v222
  %v255 = vunpack.c.l.bf16 %v223
  %v256 = vunpack.c.l.bf16 %v224
  %v257 = vunpack.c.l.bf16 %v225
  %v258 = vunpack.c.l.bf16 %v226
  %v259 = vunpack.c.l.bf16 %v227
  %v260 = vunpack.c.l.bf16 %v228
  %v261 = vunpack.c.l.bf16 %v229
  %v262 = vunpack.c.l.bf16 %v230
  %v263 = vunpack.c.l.bf16 %v231
  %v264 = vunpack.c.l.bf16 %v232
  %v265 = vunpack.c.l.bf16 %v233
  %v266 = vunpack.c.l.bf16 %v234
  %v267 = vunpack.c.l.bf16 %v235
  %v268 = vunpack.c.l.bf16 %v236
  %v269 = vunpack.c.l.bf16 %v237
  %v270 = vunpack.c.l.bf16 %v238
  %v271 = vunpack.c.l.bf16 %v239
  %v272 = vunpack.c.l.bf16 %v240
  %v273 = vld [vmem:[%s4] sm:$0xff]
  %v274 = vld [vmem:[%s4 + $0x8] sm:$0xff]
  %v275 = vld [vmem:[%s4 + $0x10] sm:$0xff]
  %v276 = vld [vmem:[%s4 + $0x18] sm:$0xff]
  %v277 = vld [vmem:[%s3] sm:$0xf]
  %v278 = vld [vmem:[%s3 + $0x4] sm:$0xf]
  %v279 = vld [vmem:[%s3 + $0x8] sm:$0xf]
  %v280 = vld [vmem:[%s3 + $0xc] sm:$0xf]
  %v281 = vld [vmem:[%s3 + $0x10] sm:$0xf]
  %v282 = vld [vmem:[%s3 + $0x14] sm:$0xf]
  %v283 = vld [vmem:[%s3 + $0x18] sm:$0xf]
  %v284 = vld [vmem:[%s3 + $0x1c] sm:$0xf]
  %v285 = vld [vmem:[%s3 + $0x20] sm:$0xf]
  %v286 = vld [vmem:[%s3 + $0x24] sm:$0xf]
  %v287 = vld [vmem:[%s3 + $0x28] sm:$0xf]
  %v288 = vld [vmem:[%s3 + $0x2c] sm:$0xf]
  %v289 = vld [vmem:[%s3 + $0x30] sm:$0xf]
  %v290 = vld [vmem:[%s3 + $0x34] sm:$0xf]
  %v291 = vld [vmem:[%s3 + $0x38] sm:$0xf]
  %v292 = vld [vmem:[%s3 + $0x3c] sm:$0xf]
  %v293 = vld [vmem:[%s3 + $0x40] sm:$0xf]
  %v294 = vld [vmem:[%s3 + $0x44] sm:$0xf]
  %v295 = vld [vmem:[%s3 + $0x48] sm:$0xf]
  %v296 = vld [vmem:[%s3 + $0x4c] sm:$0xf]
  %v297 = vld [vmem:[%s3 + $0x50] sm:$0xf]
  %v298 = vld [vmem:[%s3 + $0x54] sm:$0xf]
  %v299 = vld [vmem:[%s3 + $0x58] sm:$0xf]
  %v300 = vld [vmem:[%s3 + $0x5c] sm:$0xf]
  %v301 = vld [vmem:[%s3 + $0x60] sm:$0xf]
  %v302 = vld [vmem:[%s3 + $0x64] sm:$0xf]
  %v303 = vld [vmem:[%s3 + $0x68] sm:$0xf]
  %v304 = vld [vmem:[%s3 + $0x6c] sm:$0xf]
  %v305 = vld [vmem:[%s3 + $0x70] sm:$0xf]
  %v306 = vld [vmem:[%s3 + $0x74] sm:$0xf]
  %v307 = vld [vmem:[%s3 + $0x78] sm:$0xf]
  %v308 = vld [vmem:[%s3 + $0x7c] sm:$0xf]
  %v309 = vunpack.c.l.bf16 %v277
  %v310 = vunpack.c.l.bf16 %v278
  %v311 = vunpack.c.l.bf16 %v279
  %v312 = vunpack.c.l.bf16 %v280
  %v313 = vunpack.c.l.bf16 %v281
  %v314 = vunpack.c.l.bf16 %v282
  %v315 = vunpack.c.l.bf16 %v283
  %v316 = vunpack.c.l.bf16 %v284
  %v317 = vunpack.c.l.bf16 %v285
  %v318 = vunpack.c.l.bf16 %v286
  %v319 = vunpack.c.l.bf16 %v287
  %v320 = vunpack.c.l.bf16 %v288
  %v321 = vunpack.c.l.bf16 %v289
  %v322 = vunpack.c.l.bf16 %v290
  %v323 = vunpack.c.l.bf16 %v291
  %v324 = vunpack.c.l.bf16 %v292
  %v325 = vunpack.c.l.bf16 %v293
  %v326 = vunpack.c.l.bf16 %v294
  %v327 = vunpack.c.l.bf16 %v295
  %v328 = vunpack.c.l.bf16 %v296
  %v329 = vunpack.c.l.bf16 %v297
  %v330 = vunpack.c.l.bf16 %v298
  %v331 = vunpack.c.l.bf16 %v299
  %v332 = vunpack.c.l.bf16 %v300
  %v333 = vunpack.c.l.bf16 %v301
  %v334 = vunpack.c.l.bf16 %v302
  %v335 = vunpack.c.l.bf16 %v303
  %v336 = vunpack.c.l.bf16 %v304
  %v337 = vunpack.c.l.bf16 %v305
  %v338 = vunpack.c.l.bf16 %v306
  %v339 = vunpack.c.l.bf16 %v307
  %v340 = vunpack.c.l.bf16 %v308
  %v341 = vld [vmem:[%s5] sm:$0xff]
  %v342 = vld [vmem:[%s5 + $0x8] sm:$0xff]
  %v343 = vld [vmem:[%s5 + $0x10] sm:$0xff]
  %v344 = vld [vmem:[%s5 + $0x18] sm:$0xff]
  %vm345 = vcmask 261120
  %v347 = vsel %vm345, %v309, 0
  %v350 = vsel %vm345, %v310, 0
  %v353 = vsel %vm345, %v311, 0
  %v356 = vsel %vm345, %v312, 0
  %v359 = vsel %vm345, %v313, 0
  %v362 = vsel %vm345, %v314, 0
  %v365 = vsel %vm345, %v315, 0
  %v368 = vsel %vm345, %v316, 0
  %v371 = vsel %vm345, %v317, 0
  %v374 = vsel %vm345, %v318, 0
  %v377 = vsel %vm345, %v319, 0
  %v380 = vsel %vm345, %v320, 0
  %v383 = vsel %vm345, %v321, 0
  %v386 = vsel %vm345, %v322, 0
  %v389 = vsel %vm345, %v323, 0
  %v392 = vsel %vm345, %v324, 0
  %v395 = vsel %vm345, %v325, 0
  %v398 = vsel %vm345, %v326, 0
  %v401 = vsel %vm345, %v327, 0
  %v404 = vsel %vm345, %v328, 0
  %v407 = vsel %vm345, %v329, 0
  %v410 = vsel %vm345, %v330, 0
  %v413 = vsel %vm345, %v331, 0
  %v416 = vsel %vm345, %v332, 0
  %v419 = vsel %vm345, %v333, 0
  %v422 = vsel %vm345, %v334, 0
  %v425 = vsel %vm345, %v335, 0
  %v428 = vsel %vm345, %v336, 0
  %v431 = vsel %vm345, %v337, 0
  %v434 = vsel %vm345, %v338, 0
  %v437 = vsel %vm345, %v339, 0
  %v440 = vsel %vm345, %v340, 0
  %442 = vmatprep.subr.mxu0 0.0
  %443 = vmatpush1.msra.mxu0 %v341
  %444 = vmatprep.subr.mxu0 0.0
  %445 = vmatpush1.msra.mxu0 %v342
  %446 = vmatprep.subr.mxu0 0.0
  %447 = vmatpush1.msra.mxu0 %v343
  %448 = vmatprep.subr.mxu0 0.0
  %449 = vmatpush1.msra.mxu0 %v344
  %450 = vmatprep.subr.mxu0 0.0
  %451 = vmatpush1.msra.mxu0 0.0
  %452 = vmatprep.subr.mxu0 0.0
  %453 = vmatpush1.msra.mxu0 0.0
  %454 = vmatprep.subr.mxu0 0.0
  %455 = vmatpush1.msra.mxu0 0.0
  %456 = vmatprep.subr.mxu0 0.0
  %457 = vmatpush1.msra.mxu0 0.0
  %458 = vmatprep.subr.mxu0 0.0
  %459 = vmatpush1.msra.mxu0 0.0
  %460 = vmatprep.subr.mxu0 0.0
  %461 = vmatpush1.msra.mxu0 0.0
  %462 = vmatprep.subr.mxu0 0.0
  %463 = vmatpush1.msra.mxu0 0.0
  %464 = vmatprep.subr.mxu0 0.0
  %465 = vmatpush1.msra.mxu0 0.0
  %466 = vmatprep.subr.mxu0 0.0
  %467 = vmatpush1.msra.mxu0 0.0
  %468 = vmatprep.subr.mxu0 0.0
  %469 = vmatpush1.msra.mxu0 0.0
  %470 = vmatprep.subr.mxu0 0.0
  %471 = vmatpush1.msra.mxu0 0.0
  %472 = vmatprep.subr.mxu0 0.0
  %473 = vmatpush1.msra.mxu0 0.0
  %474 = vmatprep.subr.mxu0 0.0
  %475 = vmatpush1.msra.mxu0 0.0
  %476 = vmatprep.subr.mxu0 0.0
  %477 = vmatpush1.msra.mxu0 0.0
  %478 = vmatprep.subr.mxu0 0.0
  %479 = vmatpush1.msra.mxu0 0.0
  %480 = vmatprep.subr.mxu0 0.0
  %481 = vmatpush1.msra.mxu0 0.0
  %482 = vmatprep.subr.mxu0 0.0
  %483 = vmatpush1.msra.mxu0 0.0
  %484 = vmatprep.subr.mxu0 0.0
  %485 = vmatpush1.msra.mxu0 0.0
  %486 = vmatprep.subr.mxu0 0.0
  %487 = vmatpush1.msra.mxu0 0.0
  %488 = vmatprep.subr.mxu0 0.0
  %489 = vmatpush1.msra.mxu0 0.0
  %490 = vmatprep.subr.mxu0 0.0
  %491 = vmatpush1.msra.mxu0 0.0
  %492 = vmatprep.subr.mxu0 0.0
  %493 = vmatpush1.msra.mxu0 0.0
  %494 = vmatprep.subr.mxu0 0.0
  %495 = vmatpush1.msra.mxu0 0.0
  %496 = vmatprep.subr.mxu0 0.0
  %497 = vmatpush1.msra.mxu0 0.0
  %498 = vmatprep.subr.mxu0 0.0
  %499 = vmatpush1.msra.mxu0 0.0
  %500 = vmatprep.subr.mxu0 0.0
  %501 = vmatpush1.msra.mxu0 0.0
  %502 = vmatprep.subr.mxu0 0.0
  %503 = vmatpush1.msra.mxu0 0.0
  %504 = vmatprep.subr.mxu0 0.0
  %505 = vmatpush1.msra.mxu0 0.0
  %506 = vmatprep.mubr.f32.mxu0 0.0
  %507 = vmatmul.mubr.f32.gmra.mrb[0].mxu0 %v347
  %v508 = vpop.f32.mrb[0].mxu0
  %v509 = vadd.f32 0.0, %v508
  %v510 = vpop.f32.mrb[0].mxu0
  %511 = vmatprep.mubr.f32.mxu0 0.0
  %512 = vmatmul.mubr.f32.gmra.mrb[0].mxu0 %v350
  %v513 = vpop.f32.mrb[0].mxu0
  %v514 = vadd.f32 0.0, %v513
  %v515 = vpop.f32.mrb[0].mxu0
  %516 = vmatprep.mubr.f32.mxu0 0.0
  %517 = vmatmul.mubr.f32.gmra.mrb[0].mxu0 %v353
  %v518 = vpop.f32.mrb[0].mxu0
  %v519 = vadd.f32 0.0, %v518
  %v520 = vpop.f32.mrb[0].mxu0
  %521 = vmatprep.mubr.f32.mxu0 0.0
  %522 = vmatmul.mubr.f32.gmra.mrb[0].mxu0 %v356
  %v523 = vpop.f32.mrb[0].mxu0
  %v524 = vadd.f32 0.0, %v523
  %v525 = vpop.f32.mrb[0].mxu0
  %526 = vmatprep.mubr.f32.mxu0 0.0
  %527 = vmatmul.mubr.f32.gmra.mrb[0].mxu0 %v359
  %v528 = vpop.f32.mrb[0].mxu0
  %v529 = vadd.f32 0.0, %v528
  %v530 = vpop.f32.mrb[0].mxu0
  %531 = vmatprep.mubr.f32.mxu0 0.0
  %532 = vmatmul.mubr.f32.gmra.mrb[0].mxu0 %v362
  %v533 = vpop.f32.mrb[0].mxu0
  %v534 = vadd.f32 0.0, %v533
  %v535 = vpop.f32.mrb[0].mxu0
  %536 = vmatprep.mubr.f32.mxu0 0.0
  %537 = vmatmul.mubr.f32.gmra.mrb[0].mxu0 %v365
  %v538 = vpop.f32.mrb[0].mxu0
  %v539 = vadd.f32 0.0, %v538
  %v540 = vpop.f32.mrb[0].mxu0
  %541 = vmatprep.mubr.f32.mxu0 0.0
  %542 = vmatmul.mubr.f32.gmra.mrb[0].mxu0 %v368
  %v543 = vpop.f32.mrb[0].mxu0
  %v544 = vadd.f32 0.0, %v543
  %v545 = vpop.f32.mrb[0].mxu0
  %546 = vmatprep.mubr.f32.mxu0 0.0
  %547 = vmatmul.mubr.f32.gmra.mrb[0].mxu0 %v371
  %v548 = vpop.f32.mrb[0].mxu0
  %v549 = vadd.f32 0.0, %v548
  %v550 = vpop.f32.mrb[0].mxu0
  %551 = vmatprep.mubr.f32.mxu0 0.0
  %552 = vmatmul.mubr.f32.gmra.mrb[0].mxu0 %v374
  %v553 = vpop.f32.mrb[0].mxu0
  %v554 = vadd.f32 0.0, %v553
  %v555 = vpop.f32.mrb[0].mxu0
  %556 = vmatprep.mubr.f32.mxu0 0.0
  %557 = vmatmul.mubr.f32.gmra.mrb[0].mxu0 %v377
  %v558 = vpop.f32.mrb[0].mxu0
  %v559 = vadd.f32 0.0, %v558
  %v560 = vpop.f32.mrb[0].mxu0
  %561 = vmatprep.mubr.f32.mxu0 0.0
  %562 = vmatmul.mubr.f32.gmra.mrb[0].mxu0 %v380
  %v563 = vpop.f32.mrb[0].mxu0
  %v564 = vadd.f32 0.0, %v563
  %v565 = vpop.f32.mrb[0].mxu0
  %566 = vmatprep.mubr.f32.mxu0 0.0
  %567 = vmatmul.mubr.f32.gmra.mrb[0].mxu0 %v383
  %v568 = vpop.f32.mrb[0].mxu0
  %v569 = vadd.f32 0.0, %v568
  %v570 = vpop.f32.mrb[0].mxu0
  %571 = vmatprep.mubr.f32.mxu0 0.0
  %572 = vmatmul.mubr.f32.gmra.mrb[0].mxu0 %v386
  %v573 = vpop.f32.mrb[0].mxu0
  %v574 = vadd.f32 0.0, %v573
  %v575 = vpop.f32.mrb[0].mxu0
  %576 = vmatprep.mubr.f32.mxu0 0.0
  %577 = vmatmul.mubr.f32.gmra.mrb[0].mxu0 %v389
  %v578 = vpop.f32.mrb[0].mxu0
  %v579 = vadd.f32 0.0, %v578
  %v580 = vpop.f32.mrb[0].mxu0
  %581 = vmatprep.mubr.f32.mxu0 0.0
  %582 = vmatmul.mubr.f32.gmra.mrb[0].mxu0 %v392
  %v583 = vpop.f32.mrb[0].mxu0
  %v584 = vadd.f32 0.0, %v583
  %v585 = vpop.f32.mrb[0].mxu0
  %586 = vmatprep.mubr.f32.mxu0 0.0
  %587 = vmatmul.mubr.f32.gmra.mrb[0].mxu0 %v395
  %v588 = vpop.f32.mrb[0].mxu0
  %v589 = vadd.f32 0.0, %v588
  %v590 = vpop.f32.mrb[0].mxu0
  %591 = vmatprep.mubr.f32.mxu0 0.0
  %592 = vmatmul.mubr.f32.gmra.mrb[0].mxu0 %v398
  %v593 = vpop.f32.mrb[0].mxu0
  %v594 = vadd.f32 0.0, %v593
  %v595 = vpop.f32.mrb[0].mxu0
  %596 = vmatprep.mubr.f32.mxu0 0.0
  %597 = vmatmul.mubr.f32.gmra.mrb[0].mxu0 %v401
  %v598 = vpop.f32.mrb[0].mxu0
  %v599 = vadd.f32 0.0, %v598
  %v600 = vpop.f32.mrb[0].mxu0
  %601 = vmatprep.mubr.f32.mxu0 0.0
  %602 = vmatmul.mubr.f32.gmra.mrb[0].mxu0 %v404
  %v603 = vpop.f32.mrb[0].mxu0
  %v604 = vadd.f32 0.0, %v603
  %v605 = vpop.f32.mrb[0].mxu0
  %606 = vmatprep.mubr.f32.mxu0 0.0
  %607 = vmatmul.mubr.f32.gmra.mrb[0].mxu0 %v407
  %v608 = vpop.f32.mrb[0].mxu0
  %v609 = vadd.f32 0.0, %v608
  %v610 = vpop.f32.mrb[0].mxu0
  %611 = vmatprep.mubr.f32.mxu0 0.0
  %612 = vmatmul.mubr.f32.gmra.mrb[0].mxu0 %v410
  %v613 = vpop.f32.mrb[0].mxu0
  %v614 = vadd.f32 0.0, %v613
  %v615 = vpop.f32.mrb[0].mxu0
  %616 = vmatprep.mubr.f32.mxu0 0.0
  %617 = vmatmul.mubr.f32.gmra.mrb[0].mxu0 %v413
  %v618 = vpop.f32.mrb[0].mxu0
  %v619 = vadd.f32 0.0, %v618
  %v620 = vpop.f32.mrb[0].mxu0
  %621 = vmatprep.mubr.f32.mxu0 0.0
  %622 = vmatmul.mubr.f32.gmra.mrb[0].mxu0 %v416
  %v623 = vpop.f32.mrb[0].mxu0
  %v624 = vadd.f32 0.0, %v623
  %v625 = vpop.f32.mrb[0].mxu0
  %626 = vmatprep.mubr.f32.mxu0 0.0
  %627 = vmatmul.mubr.f32.gmra.mrb[0].mxu0 %v419
  %v628 = vpop.f32.mrb[0].mxu0
  %v629 = vadd.f32 0.0, %v628
  %v630 = vpop.f32.mrb[0].mxu0
  %631 = vmatprep.mubr.f32.mxu0 0.0
  %632 = vmatmul.mubr.f32.gmra.mrb[0].mxu0 %v422
  %v633 = vpop.f32.mrb[0].mxu0
  %v634 = vadd.f32 0.0, %v633
  %v635 = vpop.f32.mrb[0].mxu0
  %636 = vmatprep.mubr.f32.mxu0 0.0
  %637 = vmatmul.mubr.f32.gmra.mrb[0].mxu0 %v425
  %v638 = vpop.f32.mrb[0].mxu0
  %v639 = vadd.f32 0.0, %v638
  %v640 = vpop.f32.mrb[0].mxu0
  %641 = vmatprep.mubr.f32.mxu0 0.0
  %642 = vmatmul.mubr.f32.gmra.mrb[0].mxu0 %v428
  %v643 = vpop.f32.mrb[0].mxu0
  %v644 = vadd.f32 0.0, %v643
  %v645 = vpop.f32.mrb[0].mxu0
  %646 = vmatprep.mubr.f32.mxu0 0.0
  %647 = vmatmul.mubr.f32.gmra.mrb[0].mxu0 %v431
  %v648 = vpop.f32.mrb[0].mxu0
  %v649 = vadd.f32 0.0, %v648
  %v650 = vpop.f32.mrb[0].mxu0
  %651 = vmatprep.mubr.f32.mxu0 0.0
  %652 = vmatmul.mubr.f32.gmra.mrb[0].mxu0 %v434
  %v653 = vpop.f32.mrb[0].mxu0
  %v654 = vadd.f32 0.0, %v653
  %v655 = vpop.f32.mrb[0].mxu0
  %656 = vmatprep.mubr.f32.mxu0 0.0
  %657 = vmatmul.mubr.f32.gmra.mrb[0].mxu0 %v437
  %v658 = vpop.f32.mrb[0].mxu0
  %v659 = vadd.f32 0.0, %v658
  %v660 = vpop.f32.mrb[0].mxu0
  %661 = vmatprep.mubr.f32.mxu0 0.0
  %662 = vmatmul.mubr.f32.gmra.mrb[0].mxu0 %v440
  %v663 = vpop.f32.mrb[0].mxu0
  %v664 = vadd.f32 0.0, %v663
  %v665 = vpop.f32.mrb[0].mxu0
  %666 = vdwg.mxu0
  %v668 = vsel %vm345, %v241, 0
  %v671 = vsel %vm345, %v242, 0
  %v674 = vsel %vm345, %v243, 0
  %v677 = vsel %vm345, %v244, 0
  %v680 = vsel %vm345, %v245, 0
  %v683 = vsel %vm345, %v246, 0
  %v686 = vsel %vm345, %v247, 0
  %v689 = vsel %vm345, %v248, 0
  %v692 = vsel %vm345, %v249, 0
  %v695 = vsel %vm345, %v250, 0
  %v698 = vsel %vm345, %v251, 0
  %v701 = vsel %vm345, %v252, 0
  %v704 = vsel %vm345, %v253, 0
  %v707 = vsel %vm345, %v254, 0
  %v710 = vsel %vm345, %v255, 0
  %v713 = vsel %vm345, %v256, 0
  %v716 = vsel %vm345, %v257, 0
  %v719 = vsel %vm345, %v258, 0
  %v722 = vsel %vm345, %v259, 0
  %v725 = vsel %vm345, %v260, 0
  %v728 = vsel %vm345, %v261, 0
  %v731 = vsel %vm345, %v262, 0
  %v734 = vsel %vm345, %v263, 0
  %v737 = vsel %vm345, %v264, 0
  %v740 = vsel %vm345, %v265, 0
  %v743 = vsel %vm345, %v266, 0
  %v746 = vsel %vm345, %v267, 0
  %v749 = vsel %vm345, %v268, 0
  %v752 = vsel %vm345, %v269, 0
  %v755 = vsel %vm345, %v270, 0
  %v758 = vsel %vm345, %v271, 0
  %v761 = vsel %vm345, %v272, 0
  %763 = vmatprep.subr.mxu0 0.0
  %764 = vmatpush1.msra.mxu0 %v273
  %765 = vmatprep.subr.mxu0 0.0
  %766 = vmatpush1.msra.mxu0 %v274
  %767 = vmatprep.subr.mxu0 0.0
  %768 = vmatpush1.msra.mxu0 %v275
  %769 = vmatprep.subr.mxu0 0.0
  %770 = vmatpush1.msra.mxu0 %v276
  %771 = vmatprep.subr.mxu0 0.0
  %772 = vmatpush1.msra.mxu0 0.0
  %773 = vmatprep.subr.mxu0 0.0
  %774 = vmatpush1.msra.mxu0 0.0
  %775 = vmatprep.subr.mxu0 0.0
  %776 = vmatpush1.msra.mxu0 0.0
  %777 = vmatprep.subr.mxu0 0.0
  %778 = vmatpush1.msra.mxu0 0.0
  %779 = vmatprep.subr.mxu0 0.0
  %780 = vmatpush1.msra.mxu0 0.0
  %781 = vmatprep.subr.mxu0 0.0
  %782 = vmatpush1.msra.mxu0 0.0
  %783 = vmatprep.subr.mxu0 0.0
  %784 = vmatpush1.msra.mxu0 0.0
  %785 = vmatprep.subr.mxu0 0.0
  %786 = vmatpush1.msra.mxu0 0.0
  %787 = vmatprep.subr.mxu0 0.0
  %788 = vmatpush1.msra.mxu0 0.0
  %789 = vmatprep.subr.mxu0 0.0
  %790 = vmatpush1.msra.mxu0 0.0
  %791 = vmatprep.subr.mxu0 0.0
  %792 = vmatpush1.msra.mxu0 0.0
  %793 = vmatprep.subr.mxu0 0.0
  %794 = vmatpush1.msra.mxu0 0.0
  %795 = vmatprep.subr.mxu0 0.0
  %796 = vmatpush1.msra.mxu0 0.0
  %797 = vmatprep.subr.mxu0 0.0
  %798 = vmatpush1.msra.mxu0 0.0
  %799 = vmatprep.subr.mxu0 0.0
  %800 = vmatpush1.msra.mxu0 0.0
  %801 = vmatprep.subr.mxu0 0.0
  %802 = vmatpush1.msra.mxu0 0.0
  %803 = vmatprep.subr.mxu0 0.0
  %804 = vmatpush1.msra.mxu0 0.0
  %805 = vmatprep.subr.mxu0 0.0
  %806 = vmatpush1.msra.mxu0 0.0
  %807 = vmatprep.subr.mxu0 0.0
  %808 = vmatpush1.msra.mxu0 0.0
  %809 = vmatprep.subr.mxu0 0.0
  %810 = vmatpush1.msra.mxu0 0.0
  %811 = vmatprep.subr.mxu0 0.0
  %812 = vmatpush1.msra.mxu0 0.0
  %813 = vmatprep.subr.mxu0 0.0
  %814 = vmatpush1.msra.mxu0 0.0
  %815 = vmatprep.subr.mxu0 0.0
  %816 = vmatpush1.msra.mxu0 0.0
  %817 = vmatprep.subr.mxu0 0.0
  %818 = vmatpush1.msra.mxu0 0.0
  %819 = vmatprep.subr.mxu0 0.0
  %820 = vmatpush1.msra.mxu0 0.0
  %821 = vmatprep.subr.mxu0 0.0
  %822 = vmatpush1.msra.mxu0 0.0
  %823 = vmatprep.subr.mxu0 0.0
  %824 = vmatpush1.msra.mxu0 0.0
  %825 = vmatprep.subr.mxu0 0.0
  %826 = vmatpush1.msra.mxu0 0.0
  %827 = vmatprep.mubr.f32.mxu0 0.0
  %828 = vmatmul.mubr.f32.gmra.mrb[0].mxu0 %v668
  %v829 = vpop.f32.mrb[0].mxu0
  %v830 = vadd.f32 %v509, %v829
  %v831 = vpop.f32.mrb[0].mxu0
  %832 = vmatprep.mubr.f32.mxu0 0.0
  %833 = vmatmul.mubr.f32.gmra.mrb[0].mxu0 %v671
  %v834 = vpop.f32.mrb[0].mxu0
  %v835 = vadd.f32 %v514, %v834
  %v836 = vpop.f32.mrb[0].mxu0
  %837 = vmatprep.mubr.f32.mxu0 0.0
  %838 = vmatmul.mubr.f32.gmra.mrb[0].mxu0 %v674
  %v839 = vpop.f32.mrb[0].mxu0
  %v840 = vadd.f32 %v519, %v839
  %v841 = vpop.f32.mrb[0].mxu0
  %842 = vmatprep.mubr.f32.mxu0 0.0
  %843 = vmatmul.mubr.f32.gmra.mrb[0].mxu0 %v677
  %v844 = vpop.f32.mrb[0].mxu0
  %v845 = vadd.f32 %v524, %v844
  %v846 = vpop.f32.mrb[0].mxu0
  %847 = vmatprep.mubr.f32.mxu0 0.0
  %848 = vmatmul.mubr.f32.gmra.mrb[0].mxu0 %v680
  %v849 = vpop.f32.mrb[0].mxu0
  %v850 = vadd.f32 %v529, %v849
  %v851 = vpop.f32.mrb[0].mxu0
  %852 = vmatprep.mubr.f32.mxu0 0.0
  %853 = vmatmul.mubr.f32.gmra.mrb[0].mxu0 %v683
  %v854 = vpop.f32.mrb[0].mxu0
  %v855 = vadd.f32 %v534, %v854
  %v856 = vpop.f32.mrb[0].mxu0
  %857 = vmatprep.mubr.f32.mxu0 0.0
  %858 = vmatmul.mubr.f32.gmra.mrb[0].mxu0 %v686
  %v859 = vpop.f32.mrb[0].mxu0
  %v860 = vadd.f32 %v539, %v859
  %v861 = vpop.f32.mrb[0].mxu0
  %862 = vmatprep.mubr.f32.mxu0 0.0
  %863 = vmatmul.mubr.f32.gmra.mrb[0].mxu0 %v689
  %v864 = vpop.f32.mrb[0].mxu0
  %v865 = vadd.f32 %v544, %v864
  %v866 = vpop.f32.mrb[0].mxu0
  %867 = vmatprep.mubr.f32.mxu0 0.0
  %868 = vmatmul.mubr.f32.gmra.mrb[0].mxu0 %v692
  %v869 = vpop.f32.mrb[0].mxu0
  %v870 = vadd.f32 %v549, %v869
  %v871 = vpop.f32.mrb[0].mxu0
  %872 = vmatprep.mubr.f32.mxu0 0.0
  %873 = vmatmul.mubr.f32.gmra.mrb[0].mxu0 %v695
  %v874 = vpop.f32.mrb[0].mxu0
  %v875 = vadd.f32 %v554, %v874
  %v876 = vpop.f32.mrb[0].mxu0
  %877 = vmatprep.mubr.f32.mxu0 0.0
  %878 = vmatmul.mubr.f32.gmra.mrb[0].mxu0 %v698
  %v879 = vpop.f32.mrb[0].mxu0
  %v880 = vadd.f32 %v559, %v879
  %v881 = vpop.f32.mrb[0].mxu0
  %882 = vmatprep.mubr.f32.mxu0 0.0
  %883 = vmatmul.mubr.f32.gmra.mrb[0].mxu0 %v701
  %v884 = vpop.f32.mrb[0].mxu0
  %v885 = vadd.f32 %v564, %v884
  %v886 = vpop.f32.mrb[0].mxu0
  %887 = vmatprep.mubr.f32.mxu0 0.0
  %888 = vmatmul.mubr.f32.gmra.mrb[0].mxu0 %v704
  %v889 = vpop.f32.mrb[0].mxu0
  %v890 = vadd.f32 %v569, %v889
  %v891 = vpop.f32.mrb[0].mxu0
  %892 = vmatprep.mubr.f32.mxu0 0.0
  %893 = vmatmul.mubr.f32.gmra.mrb[0].mxu0 %v707
  %v894 = vpop.f32.mrb[0].mxu0
  %v895 = vadd.f32 %v574, %v894
  %v896 = vpop.f32.mrb[0].mxu0
  %897 = vmatprep.mubr.f32.mxu0 0.0
  %898 = vmatmul.mubr.f32.gmra.mrb[0].mxu0 %v710
  %v899 = vpop.f32.mrb[0].mxu0
  %v900 = vadd.f32 %v579, %v899
  %v901 = vpop.f32.mrb[0].mxu0
  %902 = vmatprep.mubr.f32.mxu0 0.0
  %903 = vmatmul.mubr.f32.gmra.mrb[0].mxu0 %v713
  %v904 = vpop.f32.mrb[0].mxu0
  %v905 = vadd.f32 %v584, %v904
  %v906 = vpop.f32.mrb[0].mxu0
  %907 = vmatprep.mubr.f32.mxu0 0.0
  %908 = vmatmul.mubr.f32.gmra.mrb[0].mxu0 %v716
  %v909 = vpop.f32.mrb[0].mxu0
  %v910 = vadd.f32 %v589, %v909
  %v911 = vpop.f32.mrb[0].mxu0
  %912 = vmatprep.mubr.f32.mxu0 0.0
  %913 = vmatmul.mubr.f32.gmra.mrb[0].mxu0 %v719
  %v914 = vpop.f32.mrb[0].mxu0
  %v915 = vadd.f32 %v594, %v914
  %v916 = vpop.f32.mrb[0].mxu0
  %917 = vmatprep.mubr.f32.mxu0 0.0
  %918 = vmatmul.mubr.f32.gmra.mrb[0].mxu0 %v722
  %v919 = vpop.f32.mrb[0].mxu0
  %v920 = vadd.f32 %v599, %v919
  %v921 = vpop.f32.mrb[0].mxu0
  %922 = vmatprep.mubr.f32.mxu0 0.0
  %923 = vmatmul.mubr.f32.gmra.mrb[0].mxu0 %v725
  %v924 = vpop.f32.mrb[0].mxu0
  %v925 = vadd.f32 %v604, %v924
  %v926 = vpop.f32.mrb[0].mxu0
  %927 = vmatprep.mubr.f32.mxu0 0.0
  %928 = vmatmul.mubr.f32.gmra.mrb[0].mxu0 %v728
  %v929 = vpop.f32.mrb[0].mxu0
  %v930 = vadd.f32 %v609, %v929
  %v931 = vpop.f32.mrb[0].mxu0
  %932 = vmatprep.mubr.f32.mxu0 0.0
  %933 = vmatmul.mubr.f32.gmra.mrb[0].mxu0 %v731
  %v934 = vpop.f32.mrb[0].mxu0
  %v935 = vadd.f32 %v614, %v934
  %v936 = vpop.f32.mrb[0].mxu0
  %937 = vmatprep.mubr.f32.mxu0 0.0
  %938 = vmatmul.mubr.f32.gmra.mrb[0].mxu0 %v734
  %v939 = vpop.f32.mrb[0].mxu0
  %v940 = vadd.f32 %v619, %v939
  %v941 = vpop.f32.mrb[0].mxu0
  %942 = vmatprep.mubr.f32.mxu0 0.0
  %943 = vmatmul.mubr.f32.gmra.mrb[0].mxu0 %v737
  %v944 = vpop.f32.mrb[0].mxu0
  %v945 = vadd.f32 %v624, %v944
  %v946 = vpop.f32.mrb[0].mxu0
  %947 = vmatprep.mubr.f32.mxu0 0.0
  %948 = vmatmul.mubr.f32.gmra.mrb[0].mxu0 %v740
  %v949 = vpop.f32.mrb[0].mxu0
  %v950 = vadd.f32 %v629, %v949
  %v951 = vpop.f32.mrb[0].mxu0
  %952 = vmatprep.mubr.f32.mxu0 0.0
  %953 = vmatmul.mubr.f32.gmra.mrb[0].mxu0 %v743
  %v954 = vpop.f32.mrb[0].mxu0
  %v955 = vadd.f32 %v634, %v954
  %v956 = vpop.f32.mrb[0].mxu0
  %957 = vmatprep.mubr.f32.mxu0 0.0
  %958 = vmatmul.mubr.f32.gmra.mrb[0].mxu0 %v746
  %v959 = vpop.f32.mrb[0].mxu0
  %v960 = vadd.f32 %v639, %v959
  %v961 = vpop.f32.mrb[0].mxu0
  %962 = vmatprep.mubr.f32.mxu0 0.0
  %963 = vmatmul.mubr.f32.gmra.mrb[0].mxu0 %v749
  %v964 = vpop.f32.mrb[0].mxu0
  %v965 = vadd.f32 %v644, %v964
  %v966 = vpop.f32.mrb[0].mxu0
  %967 = vmatprep.mubr.f32.mxu0 0.0
  %968 = vmatmul.mubr.f32.gmra.mrb[0].mxu0 %v752
  %v969 = vpop.f32.mrb[0].mxu0
  %v970 = vadd.f32 %v649, %v969
  %v971 = vpop.f32.mrb[0].mxu0
  %972 = vmatprep.mubr.f32.mxu0 0.0
  %973 = vmatmul.mubr.f32.gmra.mrb[0].mxu0 %v755
  %v974 = vpop.f32.mrb[0].mxu0
  %v975 = vadd.f32 %v654, %v974
  %v976 = vpop.f32.mrb[0].mxu0
  %977 = vmatprep.mubr.f32.mxu0 0.0
  %978 = vmatmul.mubr.f32.gmra.mrb[0].mxu0 %v758
  %v979 = vpop.f32.mrb[0].mxu0
  %v980 = vadd.f32 %v659, %v979
  %v981 = vpop.f32.mrb[0].mxu0
  %982 = vmatprep.mubr.f32.mxu0 0.0
  %983 = vmatmul.mubr.f32.gmra.mrb[0].mxu0 %v761
  %v984 = vpop.f32.mrb[0].mxu0
  %v985 = vadd.f32 %v664, %v984
  %v986 = vpop.f32.mrb[0].mxu0
  %987 = vdwg.mxu0
  %v988 = vld [vmem:[%s6] sm:$0x1]
  %v990 = vlaneseq
  %v991 = vshrl.u32 %v990, 7
  %v992 = vsub.s32 0, %v991
  %v993 = vrot.slane %v988, %v992
  %v995 = vadd.f32 %v830, %v993
  %v996 = vadd.f32 %v835, %v993
  %v997 = vadd.f32 %v840, %v993
  %v998 = vadd.f32 %v845, %v993
  %v999 = vadd.f32 %v850, %v993
  %v1000 = vadd.f32 %v855, %v993
  %v1001 = vadd.f32 %v860, %v993
  %v1002 = vadd.f32 %v865, %v993
  %v1003 = vadd.f32 %v870, %v993
  %v1004 = vadd.f32 %v875, %v993
  %v1005 = vadd.f32 %v880, %v993
  %v1006 = vadd.f32 %v885, %v993
  %v1007 = vadd.f32 %v890, %v993
  %v1008 = vadd.f32 %v895, %v993
  %v1009 = vadd.f32 %v900, %v993
  %v1010 = vadd.f32 %v905, %v993
  %v1011 = vadd.f32 %v910, %v993
  %v1012 = vadd.f32 %v915, %v993
  %v1013 = vadd.f32 %v920, %v993
  %v1014 = vadd.f32 %v925, %v993
  %v1015 = vadd.f32 %v930, %v993
  %v1016 = vadd.f32 %v935, %v993
  %v1017 = vadd.f32 %v940, %v993
  %v1018 = vadd.f32 %v945, %v993
  %v1019 = vadd.f32 %v950, %v993
  %v1020 = vadd.f32 %v955, %v993
  %v1021 = vadd.f32 %v960, %v993
  %v1022 = vadd.f32 %v965, %v993
  %v1023 = vadd.f32 %v970, %v993
  %v1024 = vadd.f32 %v975, %v993
  %v1025 = vadd.f32 %v980, %v993
  %v1026 = vadd.f32 %v985, %v993
  %v1027 = vmax.f32 %v995, 0.0
  %v1028 = vmax.f32 %v996, 0.0
  %v1029 = vmax.f32 %v997, 0.0
  %v1030 = vmax.f32 %v998, 0.0
  %v1031 = vmax.f32 %v999, 0.0
  %v1032 = vmax.f32 %v1000, 0.0
  %v1033 = vmax.f32 %v1001, 0.0
  %v1034 = vmax.f32 %v1002, 0.0
  %v1035 = vmax.f32 %v1003, 0.0
  %v1036 = vmax.f32 %v1004, 0.0
  %v1037 = vmax.f32 %v1005, 0.0
  %v1038 = vmax.f32 %v1006, 0.0
  %v1039 = vmax.f32 %v1007, 0.0
  %v1040 = vmax.f32 %v1008, 0.0
  %v1041 = vmax.f32 %v1009, 0.0
  %v1042 = vmax.f32 %v1010, 0.0
  %v1043 = vmax.f32 %v1011, 0.0
  %v1044 = vmax.f32 %v1012, 0.0
  %v1045 = vmax.f32 %v1013, 0.0
  %v1046 = vmax.f32 %v1014, 0.0
  %v1047 = vmax.f32 %v1015, 0.0
  %v1048 = vmax.f32 %v1016, 0.0
  %v1049 = vmax.f32 %v1017, 0.0
  %v1050 = vmax.f32 %v1018, 0.0
  %v1051 = vmax.f32 %v1019, 0.0
  %v1052 = vmax.f32 %v1020, 0.0
  %v1053 = vmax.f32 %v1021, 0.0
  %v1054 = vmax.f32 %v1022, 0.0
  %v1055 = vmax.f32 %v1023, 0.0
  %v1056 = vmax.f32 %v1024, 0.0
  %v1057 = vmax.f32 %v1025, 0.0
  %v1058 = vmax.f32 %v1026, 0.0
  %v1059 = vld [vmem:[%s7] sm:$0xff]
  %v1060 = vld [vmem:[%s7 + $0x8] sm:$0xff]
  %v1061 = vld [vmem:[%s7 + $0x10] sm:$0xff]
  %v1062 = vld [vmem:[%s7 + $0x18] sm:$0xff]
  %v1063 = vld [vmem:[%s7 + $0x20] sm:$0xff]
  %v1064 = vld [vmem:[%s7 + $0x28] sm:$0xff]
  %v1065 = vld [vmem:[%s7 + $0x30] sm:$0xff]
  %v1066 = vld [vmem:[%s7 + $0x38] sm:$0xff]
  %v1067 = vld [vmem:[%s8] sm:$0x1]
  %v1069 = vlaneseq
  %v1070 = vshrl.u32 %v1069, 7
  %v1071 = vsub.s32 0, %v1070
  %v1072 = vrot.slane %v1067, %v1071
  %vm1074 = vcmask 523264
  %v1076 = vsel %vm1074, %v1027, 0
  %v1079 = vsel %vm1074, %v1028, 0
  %v1082 = vsel %vm1074, %v1029, 0
  %v1085 = vsel %vm1074, %v1030, 0
  %v1088 = vsel %vm1074, %v1031, 0
  %v1091 = vsel %vm1074, %v1032, 0
  %v1094 = vsel %vm1074, %v1033, 0
  %v1097 = vsel %vm1074, %v1034, 0
  %v1100 = vsel %vm1074, %v1035, 0
  %v1103 = vsel %vm1074, %v1036, 0
  %v1106 = vsel %vm1074, %v1037, 0
  %v1109 = vsel %vm1074, %v1038, 0
  %v1112 = vsel %vm1074, %v1039, 0
  %v1115 = vsel %vm1074, %v1040, 0
  %v1118 = vsel %vm1074, %v1041, 0
  %v1121 = vsel %vm1074, %v1042, 0
  %v1124 = vsel %vm1074, %v1043, 0
  %v1127 = vsel %vm1074, %v1044, 0
  %v1130 = vsel %vm1074, %v1045, 0
  %v1133 = vsel %vm1074, %v1046, 0
  %v1136 = vsel %vm1074, %v1047, 0
  %v1139 = vsel %vm1074, %v1048, 0
  %v1142 = vsel %vm1074, %v1049, 0
  %v1145 = vsel %vm1074, %v1050, 0
  %v1148 = vsel %vm1074, %v1051, 0
  %v1151 = vsel %vm1074, %v1052, 0
  %v1154 = vsel %vm1074, %v1053, 0
  %v1157 = vsel %vm1074, %v1054, 0
  %v1160 = vsel %vm1074, %v1055, 0
  %v1163 = vsel %vm1074, %v1056, 0
  %v1166 = vsel %vm1074, %v1057, 0
  %v1169 = vsel %vm1074, %v1058, 0
  %1171 = vmatprep.subr.mxu0 0.0
  %1172 = vmatpush1.msra.mxu0 %v1059
  %1173 = vmatprep.subr.mxu0 0.0
  %1174 = vmatpush1.msra.mxu0 %v1060
  %1175 = vmatprep.subr.mxu0 0.0
  %1176 = vmatpush1.msra.mxu0 %v1061
  %1177 = vmatprep.subr.mxu0 0.0
  %1178 = vmatpush1.msra.mxu0 %v1062
  %1179 = vmatprep.subr.mxu0 0.0
  %1180 = vmatpush1.msra.mxu0 %v1063
  %1181 = vmatprep.subr.mxu0 0.0
  %1182 = vmatpush1.msra.mxu0 %v1064
  %1183 = vmatprep.subr.mxu0 0.0
  %1184 = vmatpush1.msra.mxu0 %v1065
  %1185 = vmatprep.subr.mxu0 0.0
  %1186 = vmatpush1.msra.mxu0 %v1066
  %1187 = vmatprep.subr.mxu0 0.0
  %1188 = vmatpush1.msra.mxu0 0.0
  %1189 = vmatprep.subr.mxu0 0.0
  %1190 = vmatpush1.msra.mxu0 0.0
  %1191 = vmatprep.subr.mxu0 0.0
  %1192 = vmatpush1.msra.mxu0 0.0
  %1193 = vmatprep.subr.mxu0 0.0
  %1194 = vmatpush1.msra.mxu0 0.0
  %1195 = vmatprep.subr.mxu0 0.0
  %1196 = vmatpush1.msra.mxu0 0.0
  %1197 = vmatprep.subr.mxu0 0.0
  %1198 = vmatpush1.msra.mxu0 0.0
  %1199 = vmatprep.subr.mxu0 0.0
  %1200 = vmatpush1.msra.mxu0 0.0
  %1201 = vmatprep.subr.mxu0 0.0
  %1202 = vmatpush1.msra.mxu0 0.0
  %1203 = vmatprep.subr.mxu0 0.0
  %1204 = vmatpush1.msra.mxu0 0.0
  %1205 = vmatprep.subr.mxu0 0.0
  %1206 = vmatpush1.msra.mxu0 0.0
  %1207 = vmatprep.subr.mxu0 0.0
  %1208 = vmatpush1.msra.mxu0 0.0
  %1209 = vmatprep.subr.mxu0 0.0
  %1210 = vmatpush1.msra.mxu0 0.0
  %1211 = vmatprep.subr.mxu0 0.0
  %1212 = vmatpush1.msra.mxu0 0.0
  %1213 = vmatprep.subr.mxu0 0.0
  %1214 = vmatpush1.msra.mxu0 0.0
  %1215 = vmatprep.subr.mxu0 0.0
  %1216 = vmatpush1.msra.mxu0 0.0
  %1217 = vmatprep.subr.mxu0 0.0
  %1218 = vmatpush1.msra.mxu0 0.0
  %1219 = vmatprep.subr.mxu0 0.0
  %1220 = vmatpush1.msra.mxu0 0.0
  %1221 = vmatprep.subr.mxu0 0.0
  %1222 = vmatpush1.msra.mxu0 0.0
  %1223 = vmatprep.subr.mxu0 0.0
  %1224 = vmatpush1.msra.mxu0 0.0
  %1225 = vmatprep.subr.mxu0 0.0
  %1226 = vmatpush1.msra.mxu0 0.0
  %1227 = vmatprep.subr.mxu0 0.0
  %1228 = vmatpush1.msra.mxu0 0.0
  %1229 = vmatprep.subr.mxu0 0.0
  %1230 = vmatpush1.msra.mxu0 0.0
  %1231 = vmatprep.subr.mxu0 0.0
  %1232 = vmatpush1.msra.mxu0 0.0
  %1233 = vmatprep.subr.mxu0 0.0
  %1234 = vmatpush1.msra.mxu0 0.0
  %1235 = vmatprep.mubr.f32.mxu0 0.0
  %1236 = vmatmul.mubr.f32.gmra.mrb[0].mxu0 %v1076
  %v1237 = vpop.f32.mrb[0].mxu0
  %v1238 = vadd.f32 %v1072, %v1237
  %v1239 = vpop.f32.mrb[0].mxu0
  %1240 = vmatprep.mubr.f32.mxu0 0.0
  %1241 = vmatmul.mubr.f32.gmra.mrb[0].mxu0 %v1079
  %v1242 = vpop.f32.mrb[0].mxu0
  %v1243 = vadd.f32 %v1072, %v1242
  %v1244 = vpop.f32.mrb[0].mxu0
  %1245 = vmatprep.mubr.f32.mxu0 0.0
  %1246 = vmatmul.mubr.f32.gmra.mrb[0].mxu0 %v1082
  %v1247 = vpop.f32.mrb[0].mxu0
  %v1248 = vadd.f32 %v1072, %v1247
  %v1249 = vpop.f32.mrb[0].mxu0
  %1250 = vmatprep.mubr.f32.mxu0 0.0
  %1251 = vmatmul.mubr.f32.gmra.mrb[0].mxu0 %v1085
  %v1252 = vpop.f32.mrb[0].mxu0
  %v1253 = vadd.f32 %v1072, %v1252
  %v1254 = vpop.f32.mrb[0].mxu0
  %1255 = vmatprep.mubr.f32.mxu0 0.0
  %1256 = vmatmul.mubr.f32.gmra.mrb[0].mxu0 %v1088
  %v1257 = vpop.f32.mrb[0].mxu0
  %v1258 = vadd.f32 %v1072, %v1257
  %v1259 = vpop.f32.mrb[0].mxu0
  %1260 = vmatprep.mubr.f32.mxu0 0.0
  %1261 = vmatmul.mubr.f32.gmra.mrb[0].mxu0 %v1091
  %v1262 = vpop.f32.mrb[0].mxu0
  %v1263 = vadd.f32 %v1072, %v1262
  %v1264 = vpop.f32.mrb[0].mxu0
  %1265 = vmatprep.mubr.f32.mxu0 0.0
  %1266 = vmatmul.mubr.f32.gmra.mrb[0].mxu0 %v1094
  %v1267 = vpop.f32.mrb[0].mxu0
  %v1268 = vadd.f32 %v1072, %v1267
  %v1269 = vpop.f32.mrb[0].mxu0
  %1270 = vmatprep.mubr.f32.mxu0 0.0
  %1271 = vmatmul.mubr.f32.gmra.mrb[0].mxu0 %v1097
  %v1272 = vpop.f32.mrb[0].mxu0
  %v1273 = vadd.f32 %v1072, %v1272
  %v1274 = vpop.f32.mrb[0].mxu0
  %1275 = vmatprep.mubr.f32.mxu0 0.0
  %1276 = vmatmul.mubr.f32.gmra.mrb[0].mxu0 %v1100
  %v1277 = vpop.f32.mrb[0].mxu0
  %v1278 = vadd.f32 %v1072, %v1277
  %v1279 = vpop.f32.mrb[0].mxu0
  %1280 = vmatprep.mubr.f32.mxu0 0.0
  %1281 = vmatmul.mubr.f32.gmra.mrb[0].mxu0 %v1103
  %v1282 = vpop.f32.mrb[0].mxu0
  %v1283 = vadd.f32 %v1072, %v1282
  %v1284 = vpop.f32.mrb[0].mxu0
  %1285 = vmatprep.mubr.f32.mxu0 0.0
  %1286 = vmatmul.mubr.f32.gmra.mrb[0].mxu0 %v1106
  %v1287 = vpop.f32.mrb[0].mxu0
  %v1288 = vadd.f32 %v1072, %v1287
  %v1289 = vpop.f32.mrb[0].mxu0
  %1290 = vmatprep.mubr.f32.mxu0 0.0
  %1291 = vmatmul.mubr.f32.gmra.mrb[0].mxu0 %v1109
  %v1292 = vpop.f32.mrb[0].mxu0
  %v1293 = vadd.f32 %v1072, %v1292
  %v1294 = vpop.f32.mrb[0].mxu0
  %1295 = vmatprep.mubr.f32.mxu0 0.0
  %1296 = vmatmul.mubr.f32.gmra.mrb[0].mxu0 %v1112
  %v1297 = vpop.f32.mrb[0].mxu0
  %v1298 = vadd.f32 %v1072, %v1297
  %v1299 = vpop.f32.mrb[0].mxu0
  %1300 = vmatprep.mubr.f32.mxu0 0.0
  %1301 = vmatmul.mubr.f32.gmra.mrb[0].mxu0 %v1115
  %v1302 = vpop.f32.mrb[0].mxu0
  %v1303 = vadd.f32 %v1072, %v1302
  %v1304 = vpop.f32.mrb[0].mxu0
  %1305 = vmatprep.mubr.f32.mxu0 0.0
  %1306 = vmatmul.mubr.f32.gmra.mrb[0].mxu0 %v1118
  %v1307 = vpop.f32.mrb[0].mxu0
  %v1308 = vadd.f32 %v1072, %v1307
  %v1309 = vpop.f32.mrb[0].mxu0
  %1310 = vmatprep.mubr.f32.mxu0 0.0
  %1311 = vmatmul.mubr.f32.gmra.mrb[0].mxu0 %v1121
  %v1312 = vpop.f32.mrb[0].mxu0
  %v1313 = vadd.f32 %v1072, %v1312
  %v1314 = vpop.f32.mrb[0].mxu0
  %1315 = vmatprep.mubr.f32.mxu0 0.0
  %1316 = vmatmul.mubr.f32.gmra.mrb[0].mxu0 %v1124
  %v1317 = vpop.f32.mrb[0].mxu0
  %v1318 = vadd.f32 %v1072, %v1317
  %v1319 = vpop.f32.mrb[0].mxu0
  %1320 = vmatprep.mubr.f32.mxu0 0.0
  %1321 = vmatmul.mubr.f32.gmra.mrb[0].mxu0 %v1127
  %v1322 = vpop.f32.mrb[0].mxu0
  %v1323 = vadd.f32 %v1072, %v1322
  %v1324 = vpop.f32.mrb[0].mxu0
  %1325 = vmatprep.mubr.f32.mxu0 0.0
  %1326 = vmatmul.mubr.f32.gmra.mrb[0].mxu0 %v1130
  %v1327 = vpop.f32.mrb[0].mxu0
  %v1328 = vadd.f32 %v1072, %v1327
  %v1329 = vpop.f32.mrb[0].mxu0
  %1330 = vmatprep.mubr.f32.mxu0 0.0
  %1331 = vmatmul.mubr.f32.gmra.mrb[0].mxu0 %v1133
  %v1332 = vpop.f32.mrb[0].mxu0
  %v1333 = vadd.f32 %v1072, %v1332
  %v1334 = vpop.f32.mrb[0].mxu0
  %1335 = vmatprep.mubr.f32.mxu0 0.0
  %1336 = vmatmul.mubr.f32.gmra.mrb[0].mxu0 %v1136
  %v1337 = vpop.f32.mrb[0].mxu0
  %v1338 = vadd.f32 %v1072, %v1337
  %v1339 = vpop.f32.mrb[0].mxu0
  %1340 = vmatprep.mubr.f32.mxu0 0.0
  %1341 = vmatmul.mubr.f32.gmra.mrb[0].mxu0 %v1139
  %v1342 = vpop.f32.mrb[0].mxu0
  %v1343 = vadd.f32 %v1072, %v1342
  %v1344 = vpop.f32.mrb[0].mxu0
  %1345 = vmatprep.mubr.f32.mxu0 0.0
  %1346 = vmatmul.mubr.f32.gmra.mrb[0].mxu0 %v1142
  %v1347 = vpop.f32.mrb[0].mxu0
  %v1348 = vadd.f32 %v1072, %v1347
  %v1349 = vpop.f32.mrb[0].mxu0
  %1350 = vmatprep.mubr.f32.mxu0 0.0
  %1351 = vmatmul.mubr.f32.gmra.mrb[0].mxu0 %v1145
  %v1352 = vpop.f32.mrb[0].mxu0
  %v1353 = vadd.f32 %v1072, %v1352
  %v1354 = vpop.f32.mrb[0].mxu0
  %1355 = vmatprep.mubr.f32.mxu0 0.0
  %1356 = vmatmul.mubr.f32.gmra.mrb[0].mxu0 %v1148
  %v1357 = vpop.f32.mrb[0].mxu0
  %v1358 = vadd.f32 %v1072, %v1357
  %v1359 = vpop.f32.mrb[0].mxu0
  %1360 = vmatprep.mubr.f32.mxu0 0.0
  %1361 = vmatmul.mubr.f32.gmra.mrb[0].mxu0 %v1151
  %v1362 = vpop.f32.mrb[0].mxu0
  %v1363 = vadd.f32 %v1072, %v1362
  %v1364 = vpop.f32.mrb[0].mxu0
  %1365 = vmatprep.mubr.f32.mxu0 0.0
  %1366 = vmatmul.mubr.f32.gmra.mrb[0].mxu0 %v1154
  %v1367 = vpop.f32.mrb[0].mxu0
  %v1368 = vadd.f32 %v1072, %v1367
  %v1369 = vpop.f32.mrb[0].mxu0
  %1370 = vmatprep.mubr.f32.mxu0 0.0
  %1371 = vmatmul.mubr.f32.gmra.mrb[0].mxu0 %v1157
  %v1372 = vpop.f32.mrb[0].mxu0
  %v1373 = vadd.f32 %v1072, %v1372
  %v1374 = vpop.f32.mrb[0].mxu0
  %1375 = vmatprep.mubr.f32.mxu0 0.0
  %1376 = vmatmul.mubr.f32.gmra.mrb[0].mxu0 %v1160
  %v1377 = vpop.f32.mrb[0].mxu0
  %v1378 = vadd.f32 %v1072, %v1377
  %v1379 = vpop.f32.mrb[0].mxu0
  %1380 = vmatprep.mubr.f32.mxu0 0.0
  %1381 = vmatmul.mubr.f32.gmra.mrb[0].mxu0 %v1163
  %v1382 = vpop.f32.mrb[0].mxu0
  %v1383 = vadd.f32 %v1072, %v1382
  %v1384 = vpop.f32.mrb[0].mxu0
  %1385 = vmatprep.mubr.f32.mxu0 0.0
  %1386 = vmatmul.mubr.f32.gmra.mrb[0].mxu0 %v1166
  %v1387 = vpop.f32.mrb[0].mxu0
  %v1388 = vadd.f32 %v1072, %v1387
  %v1389 = vpop.f32.mrb[0].mxu0
  %1390 = vmatprep.mubr.f32.mxu0 0.0
  %1391 = vmatmul.mubr.f32.gmra.mrb[0].mxu0 %v1169
  %v1392 = vpop.f32.mrb[0].mxu0
  %v1393 = vadd.f32 %v1072, %v1392
  %v1394 = vpop.f32.mrb[0].mxu0
  %1395 = vdwg.mxu0
  %v1396 = vmax.f32 %v1238, 0.0
  %v1397 = vmax.f32 %v1243, 0.0
  %v1398 = vmax.f32 %v1248, 0.0
  %v1399 = vmax.f32 %v1253, 0.0
  %v1400 = vmax.f32 %v1258, 0.0
  %v1401 = vmax.f32 %v1263, 0.0
  %v1402 = vmax.f32 %v1268, 0.0
  %v1403 = vmax.f32 %v1273, 0.0
  %v1404 = vmax.f32 %v1278, 0.0
  %v1405 = vmax.f32 %v1283, 0.0
  %v1406 = vmax.f32 %v1288, 0.0
  %v1407 = vmax.f32 %v1293, 0.0
  %v1408 = vmax.f32 %v1298, 0.0
  %v1409 = vmax.f32 %v1303, 0.0
  %v1410 = vmax.f32 %v1308, 0.0
  %v1411 = vmax.f32 %v1313, 0.0
  %v1412 = vmax.f32 %v1318, 0.0
  %v1413 = vmax.f32 %v1323, 0.0
  %v1414 = vmax.f32 %v1328, 0.0
  %v1415 = vmax.f32 %v1333, 0.0
  %v1416 = vmax.f32 %v1338, 0.0
  %v1417 = vmax.f32 %v1343, 0.0
  %v1418 = vmax.f32 %v1348, 0.0
  %v1419 = vmax.f32 %v1353, 0.0
  %v1420 = vmax.f32 %v1358, 0.0
  %v1421 = vmax.f32 %v1363, 0.0
  %v1422 = vmax.f32 %v1368, 0.0
  %v1423 = vmax.f32 %v1373, 0.0
  %v1424 = vmax.f32 %v1378, 0.0
  %v1425 = vmax.f32 %v1383, 0.0
  %v1426 = vmax.f32 %v1388, 0.0
  %v1427 = vmax.f32 %v1393, 0.0
  %v1428 = vld [vmem:[%s9] sm:$0xff]
  %v1429 = vld [vmem:[%s9 + $0x8] sm:$0xff]
  %v1430 = vld [vmem:[%s9 + $0x10] sm:$0xff]
  %v1431 = vld [vmem:[%s9 + $0x18] sm:$0xff]
  %v1432 = vld [vmem:[%s10] sm:$0x1]
  %v1434 = vlaneseq
  %v1435 = vshrl.u32 %v1434, 7
  %v1436 = vsub.s32 0, %v1435
  %v1437 = vrot.slane %v1432, %v1436
  %v1440 = vsel %vm345, %v1396, 0
  %v1443 = vsel %vm345, %v1397, 0
  %v1446 = vsel %vm345, %v1398, 0
  %v1449 = vsel %vm345, %v1399, 0
  %v1452 = vsel %vm345, %v1400, 0
  %v1455 = vsel %vm345, %v1401, 0
  %v1458 = vsel %vm345, %v1402, 0
  %v1461 = vsel %vm345, %v1403, 0
  %v1464 = vsel %vm345, %v1404, 0
  %v1467 = vsel %vm345, %v1405, 0
  %v1470 = vsel %vm345, %v1406, 0
  %v1473 = vsel %vm345, %v1407, 0
  %v1476 = vsel %vm345, %v1408, 0
  %v1479 = vsel %vm345, %v1409, 0
  %v1482 = vsel %vm345, %v1410, 0
  %v1485 = vsel %vm345, %v1411, 0
  %v1488 = vsel %vm345, %v1412, 0
  %v1491 = vsel %vm345, %v1413, 0
  %v1494 = vsel %vm345, %v1414, 0
  %v1497 = vsel %vm345, %v1415, 0
  %v1500 = vsel %vm345, %v1416, 0
  %v1503 = vsel %vm345, %v1417, 0
  %v1506 = vsel %vm345, %v1418, 0
  %v1509 = vsel %vm345, %v1419, 0
  %v1512 = vsel %vm345, %v1420, 0
  %v1515 = vsel %vm345, %v1421, 0
  %v1518 = vsel %vm345, %v1422, 0
  %v1521 = vsel %vm345, %v1423, 0
  %v1524 = vsel %vm345, %v1424, 0
  %v1527 = vsel %vm345, %v1425, 0
  %v1530 = vsel %vm345, %v1426, 0
  %v1533 = vsel %vm345, %v1427, 0
  %1535 = vmatprep.subr.mxu0 0.0
  %1536 = vmatpush1.msra.mxu0 %v1428
  %1537 = vmatprep.subr.mxu0 0.0
  %1538 = vmatpush1.msra.mxu0 %v1429
  %1539 = vmatprep.subr.mxu0 0.0
  %1540 = vmatpush1.msra.mxu0 %v1430
  %1541 = vmatprep.subr.mxu0 0.0
  %1542 = vmatpush1.msra.mxu0 %v1431
  %1543 = vmatprep.subr.mxu0 0.0
  %1544 = vmatpush1.msra.mxu0 0.0
  %1545 = vmatprep.subr.mxu0 0.0
  %1546 = vmatpush1.msra.mxu0 0.0
  %1547 = vmatprep.subr.mxu0 0.0
  %1548 = vmatpush1.msra.mxu0 0.0
  %1549 = vmatprep.subr.mxu0 0.0
  %1550 = vmatpush1.msra.mxu0 0.0
  %1551 = vmatprep.subr.mxu0 0.0
  %1552 = vmatpush1.msra.mxu0 0.0
  %1553 = vmatprep.subr.mxu0 0.0
  %1554 = vmatpush1.msra.mxu0 0.0
  %1555 = vmatprep.subr.mxu0 0.0
  %1556 = vmatpush1.msra.mxu0 0.0
  %1557 = vmatprep.subr.mxu0 0.0
  %1558 = vmatpush1.msra.mxu0 0.0
  %1559 = vmatprep.subr.mxu0 0.0
  %1560 = vmatpush1.msra.mxu0 0.0
  %1561 = vmatprep.subr.mxu0 0.0
  %1562 = vmatpush1.msra.mxu0 0.0
  %1563 = vmatprep.subr.mxu0 0.0
  %1564 = vmatpush1.msra.mxu0 0.0
  %1565 = vmatprep.subr.mxu0 0.0
  %1566 = vmatpush1.msra.mxu0 0.0
  %1567 = vmatprep.subr.mxu0 0.0
  %1568 = vmatpush1.msra.mxu0 0.0
  %1569 = vmatprep.subr.mxu0 0.0
  %1570 = vmatpush1.msra.mxu0 0.0
  %1571 = vmatprep.subr.mxu0 0.0
  %1572 = vmatpush1.msra.mxu0 0.0
  %1573 = vmatprep.subr.mxu0 0.0
  %1574 = vmatpush1.msra.mxu0 0.0
  %1575 = vmatprep.subr.mxu0 0.0
  %1576 = vmatpush1.msra.mxu0 0.0
  %1577 = vmatprep.subr.mxu0 0.0
  %1578 = vmatpush1.msra.mxu0 0.0
  %1579 = vmatprep.subr.mxu0 0.0
  %1580 = vmatpush1.msra.mxu0 0.0
  %1581 = vmatprep.subr.mxu0 0.0
  %1582 = vmatpush1.msra.mxu0 0.0
  %1583 = vmatprep.subr.mxu0 0.0
  %1584 = vmatpush1.msra.mxu0 0.0
  %1585 = vmatprep.subr.mxu0 0.0
  %1586 = vmatpush1.msra.mxu0 0.0
  %1587 = vmatprep.subr.mxu0 0.0
  %1588 = vmatpush1.msra.mxu0 0.0
  %1589 = vmatprep.subr.mxu0 0.0
  %1590 = vmatpush1.msra.mxu0 0.0
  %1591 = vmatprep.subr.mxu0 0.0
  %1592 = vmatpush1.msra.mxu0 0.0
  %1593 = vmatprep.subr.mxu0 0.0
  %1594 = vmatpush1.msra.mxu0 0.0
  %1595 = vmatprep.subr.mxu0 0.0
  %1596 = vmatpush1.msra.mxu0 0.0
  %1597 = vmatprep.subr.mxu0 0.0
  %1598 = vmatpush1.msra.mxu0 0.0
  %1599 = vmatprep.mubr.f32.mxu0 0.0
  %1600 = vmatmul.mubr.f32.gmra.mrb[0].mxu0 %v1440
  %v1601 = vpop.f32.mrb[0].mxu0
  %v1602 = vadd.f32 %v1437, %v1601
  %v1603 = vpop.f32.mrb[0].mxu0
  %1604 = vmatprep.mubr.f32.mxu0 0.0
  %1605 = vmatmul.mubr.f32.gmra.mrb[0].mxu0 %v1443
  %v1606 = vpop.f32.mrb[0].mxu0
  %v1607 = vadd.f32 %v1437, %v1606
  %v1608 = vpop.f32.mrb[0].mxu0
  %1609 = vmatprep.mubr.f32.mxu0 0.0
  %1610 = vmatmul.mubr.f32.gmra.mrb[0].mxu0 %v1446
  %v1611 = vpop.f32.mrb[0].mxu0
  %v1612 = vadd.f32 %v1437, %v1611
  %v1613 = vpop.f32.mrb[0].mxu0
  %1614 = vmatprep.mubr.f32.mxu0 0.0
  %1615 = vmatmul.mubr.f32.gmra.mrb[0].mxu0 %v1449
  %v1616 = vpop.f32.mrb[0].mxu0
  %v1617 = vadd.f32 %v1437, %v1616
  %v1618 = vpop.f32.mrb[0].mxu0
  %1619 = vmatprep.mubr.f32.mxu0 0.0
  %1620 = vmatmul.mubr.f32.gmra.mrb[0].mxu0 %v1452
  %v1621 = vpop.f32.mrb[0].mxu0
  %v1622 = vadd.f32 %v1437, %v1621
  %v1623 = vpop.f32.mrb[0].mxu0
  %1624 = vmatprep.mubr.f32.mxu0 0.0
  %1625 = vmatmul.mubr.f32.gmra.mrb[0].mxu0 %v1455
  %v1626 = vpop.f32.mrb[0].mxu0
  %v1627 = vadd.f32 %v1437, %v1626
  %v1628 = vpop.f32.mrb[0].mxu0
  %1629 = vmatprep.mubr.f32.mxu0 0.0
  %1630 = vmatmul.mubr.f32.gmra.mrb[0].mxu0 %v1458
  %v1631 = vpop.f32.mrb[0].mxu0
  %v1632 = vadd.f32 %v1437, %v1631
  %v1633 = vpop.f32.mrb[0].mxu0
  %1634 = vmatprep.mubr.f32.mxu0 0.0
  %1635 = vmatmul.mubr.f32.gmra.mrb[0].mxu0 %v1461
  %v1636 = vpop.f32.mrb[0].mxu0
  %v1637 = vadd.f32 %v1437, %v1636
  %v1638 = vpop.f32.mrb[0].mxu0
  %1639 = vmatprep.mubr.f32.mxu0 0.0
  %1640 = vmatmul.mubr.f32.gmra.mrb[0].mxu0 %v1464
  %v1641 = vpop.f32.mrb[0].mxu0
  %v1642 = vadd.f32 %v1437, %v1641
  %v1643 = vpop.f32.mrb[0].mxu0
  %1644 = vmatprep.mubr.f32.mxu0 0.0
  %1645 = vmatmul.mubr.f32.gmra.mrb[0].mxu0 %v1467
  %v1646 = vpop.f32.mrb[0].mxu0
  %v1647 = vadd.f32 %v1437, %v1646
  %v1648 = vpop.f32.mrb[0].mxu0
  %1649 = vmatprep.mubr.f32.mxu0 0.0
  %1650 = vmatmul.mubr.f32.gmra.mrb[0].mxu0 %v1470
  %v1651 = vpop.f32.mrb[0].mxu0
  %v1652 = vadd.f32 %v1437, %v1651
  %v1653 = vpop.f32.mrb[0].mxu0
  %1654 = vmatprep.mubr.f32.mxu0 0.0
  %1655 = vmatmul.mubr.f32.gmra.mrb[0].mxu0 %v1473
  %v1656 = vpop.f32.mrb[0].mxu0
  %v1657 = vadd.f32 %v1437, %v1656
  %v1658 = vpop.f32.mrb[0].mxu0
  %1659 = vmatprep.mubr.f32.mxu0 0.0
  %1660 = vmatmul.mubr.f32.gmra.mrb[0].mxu0 %v1476
  %v1661 = vpop.f32.mrb[0].mxu0
  %v1662 = vadd.f32 %v1437, %v1661
  %v1663 = vpop.f32.mrb[0].mxu0
  %1664 = vmatprep.mubr.f32.mxu0 0.0
  %1665 = vmatmul.mubr.f32.gmra.mrb[0].mxu0 %v1479
  %v1666 = vpop.f32.mrb[0].mxu0
  %v1667 = vadd.f32 %v1437, %v1666
  %v1668 = vpop.f32.mrb[0].mxu0
  %1669 = vmatprep.mubr.f32.mxu0 0.0
  %1670 = vmatmul.mubr.f32.gmra.mrb[0].mxu0 %v1482
  %v1671 = vpop.f32.mrb[0].mxu0
  %v1672 = vadd.f32 %v1437, %v1671
  %v1673 = vpop.f32.mrb[0].mxu0
  %1674 = vmatprep.mubr.f32.mxu0 0.0
  %1675 = vmatmul.mubr.f32.gmra.mrb[0].mxu0 %v1485
  %v1676 = vpop.f32.mrb[0].mxu0
  %v1677 = vadd.f32 %v1437, %v1676
  %v1678 = vpop.f32.mrb[0].mxu0
  %1679 = vmatprep.mubr.f32.mxu0 0.0
  %1680 = vmatmul.mubr.f32.gmra.mrb[0].mxu0 %v1488
  %v1681 = vpop.f32.mrb[0].mxu0
  %v1682 = vadd.f32 %v1437, %v1681
  %v1683 = vpop.f32.mrb[0].mxu0
  %1684 = vmatprep.mubr.f32.mxu0 0.0
  %1685 = vmatmul.mubr.f32.gmra.mrb[0].mxu0 %v1491
  %v1686 = vpop.f32.mrb[0].mxu0
  %v1687 = vadd.f32 %v1437, %v1686
  %v1688 = vpop.f32.mrb[0].mxu0
  %1689 = vmatprep.mubr.f32.mxu0 0.0
  %1690 = vmatmul.mubr.f32.gmra.mrb[0].mxu0 %v1494
  %v1691 = vpop.f32.mrb[0].mxu0
  %v1692 = vadd.f32 %v1437, %v1691
  %v1693 = vpop.f32.mrb[0].mxu0
  %1694 = vmatprep.mubr.f32.mxu0 0.0
  %1695 = vmatmul.mubr.f32.gmra.mrb[0].mxu0 %v1497
  %v1696 = vpop.f32.mrb[0].mxu0
  %v1697 = vadd.f32 %v1437, %v1696
  %v1698 = vpop.f32.mrb[0].mxu0
  %1699 = vmatprep.mubr.f32.mxu0 0.0
  %1700 = vmatmul.mubr.f32.gmra.mrb[0].mxu0 %v1500
  %v1701 = vpop.f32.mrb[0].mxu0
  %v1702 = vadd.f32 %v1437, %v1701
  %v1703 = vpop.f32.mrb[0].mxu0
  %1704 = vmatprep.mubr.f32.mxu0 0.0
  %1705 = vmatmul.mubr.f32.gmra.mrb[0].mxu0 %v1503
  %v1706 = vpop.f32.mrb[0].mxu0
  %v1707 = vadd.f32 %v1437, %v1706
  %v1708 = vpop.f32.mrb[0].mxu0
  %1709 = vmatprep.mubr.f32.mxu0 0.0
  %1710 = vmatmul.mubr.f32.gmra.mrb[0].mxu0 %v1506
  %v1711 = vpop.f32.mrb[0].mxu0
  %v1712 = vadd.f32 %v1437, %v1711
  %v1713 = vpop.f32.mrb[0].mxu0
  %1714 = vmatprep.mubr.f32.mxu0 0.0
  %1715 = vmatmul.mubr.f32.gmra.mrb[0].mxu0 %v1509
  %v1716 = vpop.f32.mrb[0].mxu0
  %v1717 = vadd.f32 %v1437, %v1716
  %v1718 = vpop.f32.mrb[0].mxu0
  %1719 = vmatprep.mubr.f32.mxu0 0.0
  %1720 = vmatmul.mubr.f32.gmra.mrb[0].mxu0 %v1512
  %v1721 = vpop.f32.mrb[0].mxu0
  %v1722 = vadd.f32 %v1437, %v1721
  %v1723 = vpop.f32.mrb[0].mxu0
  %1724 = vmatprep.mubr.f32.mxu0 0.0
  %1725 = vmatmul.mubr.f32.gmra.mrb[0].mxu0 %v1515
  %v1726 = vpop.f32.mrb[0].mxu0
  %v1727 = vadd.f32 %v1437, %v1726
  %v1728 = vpop.f32.mrb[0].mxu0
  %1729 = vmatprep.mubr.f32.mxu0 0.0
  %1730 = vmatmul.mubr.f32.gmra.mrb[0].mxu0 %v1518
  %v1731 = vpop.f32.mrb[0].mxu0
  %v1732 = vadd.f32 %v1437, %v1731
  %v1733 = vpop.f32.mrb[0].mxu0
  %1734 = vmatprep.mubr.f32.mxu0 0.0
  %1735 = vmatmul.mubr.f32.gmra.mrb[0].mxu0 %v1521
  %v1736 = vpop.f32.mrb[0].mxu0
  %v1737 = vadd.f32 %v1437, %v1736
  %v1738 = vpop.f32.mrb[0].mxu0
  %1739 = vmatprep.mubr.f32.mxu0 0.0
  %1740 = vmatmul.mubr.f32.gmra.mrb[0].mxu0 %v1524
  %v1741 = vpop.f32.mrb[0].mxu0
  %v1742 = vadd.f32 %v1437, %v1741
  %v1743 = vpop.f32.mrb[0].mxu0
  %1744 = vmatprep.mubr.f32.mxu0 0.0
  %1745 = vmatmul.mubr.f32.gmra.mrb[0].mxu0 %v1527
  %v1746 = vpop.f32.mrb[0].mxu0
  %v1747 = vadd.f32 %v1437, %v1746
  %v1748 = vpop.f32.mrb[0].mxu0
  %1749 = vmatprep.mubr.f32.mxu0 0.0
  %1750 = vmatmul.mubr.f32.gmra.mrb[0].mxu0 %v1530
  %v1751 = vpop.f32.mrb[0].mxu0
  %v1752 = vadd.f32 %v1437, %v1751
  %v1753 = vpop.f32.mrb[0].mxu0
  %1754 = vmatprep.mubr.f32.mxu0 0.0
  %1755 = vmatmul.mubr.f32.gmra.mrb[0].mxu0 %v1533
  %v1756 = vpop.f32.mrb[0].mxu0
  %v1757 = vadd.f32 %v1437, %v1756
  %v1758 = vpop.f32.mrb[0].mxu0
  %1759 = vdwg.mxu0
  %v1760 = vmax.f32 %v1602, 0.0
  %v1761 = vmax.f32 %v1607, 0.0
  %v1762 = vmax.f32 %v1612, 0.0
  %v1763 = vmax.f32 %v1617, 0.0
  %v1764 = vmax.f32 %v1622, 0.0
  %v1765 = vmax.f32 %v1627, 0.0
  %v1766 = vmax.f32 %v1632, 0.0
  %v1767 = vmax.f32 %v1637, 0.0
  %v1768 = vmax.f32 %v1642, 0.0
  %v1769 = vmax.f32 %v1647, 0.0
  %v1770 = vmax.f32 %v1652, 0.0
  %v1771 = vmax.f32 %v1657, 0.0
  %v1772 = vmax.f32 %v1662, 0.0
  %v1773 = vmax.f32 %v1667, 0.0
  %v1774 = vmax.f32 %v1672, 0.0
  %v1775 = vmax.f32 %v1677, 0.0
  %v1776 = vmax.f32 %v1682, 0.0
  %v1777 = vmax.f32 %v1687, 0.0
  %v1778 = vmax.f32 %v1692, 0.0
  %v1779 = vmax.f32 %v1697, 0.0
  %v1780 = vmax.f32 %v1702, 0.0
  %v1781 = vmax.f32 %v1707, 0.0
  %v1782 = vmax.f32 %v1712, 0.0
  %v1783 = vmax.f32 %v1717, 0.0
  %v1784 = vmax.f32 %v1722, 0.0
  %v1785 = vmax.f32 %v1727, 0.0
  %v1786 = vmax.f32 %v1732, 0.0
  %v1787 = vmax.f32 %v1737, 0.0
  %v1788 = vmax.f32 %v1742, 0.0
  %v1789 = vmax.f32 %v1747, 0.0
  %v1790 = vmax.f32 %v1752, 0.0
  %v1791 = vmax.f32 %v1757, 0.0
  %v1792 = vld [vmem:[%s11] sm:$0x1]
  %v1794 = vlaneseq
  %v1795 = vshrl.u32 %v1794, 7
  %v1796 = vsub.s32 0, %v1795
  %v1797 = vrot.slane %v1792, %v1796
  %v1799 = vmul.f32 %v177, %v1797
  %v1800 = vmul.f32 %v178, %v1797
  %v1801 = vmul.f32 %v179, %v1797
  %v1802 = vmul.f32 %v180, %v1797
  %v1803 = vmul.f32 %v181, %v1797
  %v1804 = vmul.f32 %v182, %v1797
  %v1805 = vmul.f32 %v183, %v1797
  %v1806 = vmul.f32 %v184, %v1797
  %v1807 = vmul.f32 %v185, %v1797
  %v1808 = vmul.f32 %v186, %v1797
  %v1809 = vmul.f32 %v187, %v1797
  %v1810 = vmul.f32 %v188, %v1797
  %v1811 = vmul.f32 %v189, %v1797
  %v1812 = vmul.f32 %v190, %v1797
  %v1813 = vmul.f32 %v191, %v1797
  %v1814 = vmul.f32 %v192, %v1797
  %v1815 = vmul.f32 %v193, %v1797
  %v1816 = vmul.f32 %v194, %v1797
  %v1817 = vmul.f32 %v195, %v1797
  %v1818 = vmul.f32 %v196, %v1797
  %v1819 = vmul.f32 %v197, %v1797
  %v1820 = vmul.f32 %v198, %v1797
  %v1821 = vmul.f32 %v199, %v1797
  %v1822 = vmul.f32 %v200, %v1797
  %v1823 = vmul.f32 %v201, %v1797
  %v1824 = vmul.f32 %v202, %v1797
  %v1825 = vmul.f32 %v203, %v1797
  %v1826 = vmul.f32 %v204, %v1797
  %v1827 = vmul.f32 %v205, %v1797
  %v1828 = vmul.f32 %v206, %v1797
  %v1829 = vmul.f32 %v207, %v1797
  %v1830 = vmul.f32 %v208, %v1797
  %v1831 = vsel %vm345, %v1799, 0.0
  %1832 = vadd.xlane.f32.xlu0 %v1831
  %v1833 = vpop.xlane.xlu0 %1832
  %v1834 = vsel %vm345, %v1800, 0.0
  %1835 = vadd.xlane.f32.xlu0 %v1834
  %v1836 = vpop.xlane.xlu0 %1835
  %v1837 = vsel %vm345, %v1801, 0.0
  %1838 = vadd.xlane.f32.xlu0 %v1837
  %v1839 = vpop.xlane.xlu0 %1838
  %v1840 = vsel %vm345, %v1802, 0.0
  %1841 = vadd.xlane.f32.xlu0 %v1840
  %v1842 = vpop.xlane.xlu0 %1841
  %v1843 = vsel %vm345, %v1803, 0.0
  %1844 = vadd.xlane.f32.xlu0 %v1843
  %v1845 = vpop.xlane.xlu0 %1844
  %v1846 = vsel %vm345, %v1804, 0.0
  %1847 = vadd.xlane.f32.xlu0 %v1846
  %v1848 = vpop.xlane.xlu0 %1847
  %v1849 = vsel %vm345, %v1805, 0.0
  %1850 = vadd.xlane.f32.xlu0 %v1849
  %v1851 = vpop.xlane.xlu0 %1850
  %v1852 = vsel %vm345, %v1806, 0.0
  %1853 = vadd.xlane.f32.xlu0 %v1852
  %v1854 = vpop.xlane.xlu0 %1853
  %v1855 = vsel %vm345, %v1807, 0.0
  %1856 = vadd.xlane.f32.xlu0 %v1855
  %v1857 = vpop.xlane.xlu0 %1856
  %v1858 = vsel %vm345, %v1808, 0.0
  %1859 = vadd.xlane.f32.xlu0 %v1858
  %v1860 = vpop.xlane.xlu0 %1859
  %v1861 = vsel %vm345, %v1809, 0.0
  %1862 = vadd.xlane.f32.xlu0 %v1861
  %v1863 = vpop.xlane.xlu0 %1862
  %v1864 = vsel %vm345, %v1810, 0.0
  %1865 = vadd.xlane.f32.xlu0 %v1864
  %v1866 = vpop.xlane.xlu0 %1865
  %v1867 = vsel %vm345, %v1811, 0.0
  %1868 = vadd.xlane.f32.xlu0 %v1867
  %v1869 = vpop.xlane.xlu0 %1868
  %v1870 = vsel %vm345, %v1812, 0.0
  %1871 = vadd.xlane.f32.xlu0 %v1870
  %v1872 = vpop.xlane.xlu0 %1871
  %v1873 = vsel %vm345, %v1813, 0.0
  %1874 = vadd.xlane.f32.xlu0 %v1873
  %v1875 = vpop.xlane.xlu0 %1874
  %v1876 = vsel %vm345, %v1814, 0.0
  %1877 = vadd.xlane.f32.xlu0 %v1876
  %v1878 = vpop.xlane.xlu0 %1877
  %v1879 = vsel %vm345, %v1815, 0.0
  %1880 = vadd.xlane.f32.xlu0 %v1879
  %v1881 = vpop.xlane.xlu0 %1880
  %v1882 = vsel %vm345, %v1816, 0.0
  %1883 = vadd.xlane.f32.xlu0 %v1882
  %v1884 = vpop.xlane.xlu0 %1883
  %v1885 = vsel %vm345, %v1817, 0.0
  %1886 = vadd.xlane.f32.xlu0 %v1885
  %v1887 = vpop.xlane.xlu0 %1886
  %v1888 = vsel %vm345, %v1818, 0.0
  %1889 = vadd.xlane.f32.xlu0 %v1888
  %v1890 = vpop.xlane.xlu0 %1889
  %v1891 = vsel %vm345, %v1819, 0.0
  %1892 = vadd.xlane.f32.xlu0 %v1891
  %v1893 = vpop.xlane.xlu0 %1892
  %v1894 = vsel %vm345, %v1820, 0.0
  %1895 = vadd.xlane.f32.xlu0 %v1894
  %v1896 = vpop.xlane.xlu0 %1895
  %v1897 = vsel %vm345, %v1821, 0.0
  %1898 = vadd.xlane.f32.xlu0 %v1897
  %v1899 = vpop.xlane.xlu0 %1898
  %v1900 = vsel %vm345, %v1822, 0.0
  %1901 = vadd.xlane.f32.xlu0 %v1900
  %v1902 = vpop.xlane.xlu0 %1901
  %v1903 = vsel %vm345, %v1823, 0.0
  %1904 = vadd.xlane.f32.xlu0 %v1903
  %v1905 = vpop.xlane.xlu0 %1904
  %v1906 = vsel %vm345, %v1824, 0.0
  %1907 = vadd.xlane.f32.xlu0 %v1906
  %v1908 = vpop.xlane.xlu0 %1907
  %v1909 = vsel %vm345, %v1825, 0.0
  %1910 = vadd.xlane.f32.xlu0 %v1909
  %v1911 = vpop.xlane.xlu0 %1910
  %v1912 = vsel %vm345, %v1826, 0.0
  %1913 = vadd.xlane.f32.xlu0 %v1912
  %v1914 = vpop.xlane.xlu0 %1913
  %v1915 = vsel %vm345, %v1827, 0.0
  %1916 = vadd.xlane.f32.xlu0 %v1915
  %v1917 = vpop.xlane.xlu0 %1916
  %v1918 = vsel %vm345, %v1828, 0.0
  %1919 = vadd.xlane.f32.xlu0 %v1918
  %v1920 = vpop.xlane.xlu0 %1919
  %v1921 = vsel %vm345, %v1829, 0.0
  %1922 = vadd.xlane.f32.xlu0 %v1921
  %v1923 = vpop.xlane.xlu0 %1922
  %v1924 = vsel %vm345, %v1830, 0.0
  %1925 = vadd.xlane.f32.xlu0 %v1924
  %v1926 = vpop.xlane.xlu0 %1925
  %v1927 = vld [vmem:[%s12] sm:$0x1]
  %v1929 = vlaneseq
  %v1930 = vshrl.u32 %v1929, 7
  %v1931 = vsub.s32 0, %v1930
  %v1932 = vrot.slane %v1927, %v1931
  %v1934 = vmul.f32 %v1760, %v1932
  %v1935 = vmul.f32 %v1761, %v1932
  %v1936 = vmul.f32 %v1762, %v1932
  %v1937 = vmul.f32 %v1763, %v1932
  %v1938 = vmul.f32 %v1764, %v1932
  %v1939 = vmul.f32 %v1765, %v1932
  %v1940 = vmul.f32 %v1766, %v1932
  %v1941 = vmul.f32 %v1767, %v1932
  %v1942 = vmul.f32 %v1768, %v1932
  %v1943 = vmul.f32 %v1769, %v1932
  %v1944 = vmul.f32 %v1770, %v1932
  %v1945 = vmul.f32 %v1771, %v1932
  %v1946 = vmul.f32 %v1772, %v1932
  %v1947 = vmul.f32 %v1773, %v1932
  %v1948 = vmul.f32 %v1774, %v1932
  %v1949 = vmul.f32 %v1775, %v1932
  %v1950 = vmul.f32 %v1776, %v1932
  %v1951 = vmul.f32 %v1777, %v1932
  %v1952 = vmul.f32 %v1778, %v1932
  %v1953 = vmul.f32 %v1779, %v1932
  %v1954 = vmul.f32 %v1780, %v1932
  %v1955 = vmul.f32 %v1781, %v1932
  %v1956 = vmul.f32 %v1782, %v1932
  %v1957 = vmul.f32 %v1783, %v1932
  %v1958 = vmul.f32 %v1784, %v1932
  %v1959 = vmul.f32 %v1785, %v1932
  %v1960 = vmul.f32 %v1786, %v1932
  %v1961 = vmul.f32 %v1787, %v1932
  %v1962 = vmul.f32 %v1788, %v1932
  %v1963 = vmul.f32 %v1789, %v1932
  %v1964 = vmul.f32 %v1790, %v1932
  %v1965 = vmul.f32 %v1791, %v1932
  %vm1966 = vcmask 130048
  %v1967 = vsel %vm1966, %v1934, 0.0
  %1968 = vadd.xlane.f32.xlu0 %v1967
  %v1969 = vpop.xlane.xlu0 %1968
  %v1970 = vsel %vm1966, %v1935, 0.0
  %1971 = vadd.xlane.f32.xlu0 %v1970
  %v1972 = vpop.xlane.xlu0 %1971
  %v1973 = vsel %vm1966, %v1936, 0.0
  %1974 = vadd.xlane.f32.xlu0 %v1973
  %v1975 = vpop.xlane.xlu0 %1974
  %v1976 = vsel %vm1966, %v1937, 0.0
  %1977 = vadd.xlane.f32.xlu0 %v1976
  %v1978 = vpop.xlane.xlu0 %1977
  %v1979 = vsel %vm1966, %v1938, 0.0
  %1980 = vadd.xlane.f32.xlu0 %v1979
  %v1981 = vpop.xlane.xlu0 %1980
  %v1982 = vsel %vm1966, %v1939, 0.0
  %1983 = vadd.xlane.f32.xlu0 %v1982
  %v1984 = vpop.xlane.xlu0 %1983
  %v1985 = vsel %vm1966, %v1940, 0.0
  %1986 = vadd.xlane.f32.xlu0 %v1985
  %v1987 = vpop.xlane.xlu0 %1986
  %v1988 = vsel %vm1966, %v1941, 0.0
  %1989 = vadd.xlane.f32.xlu0 %v1988
  %v1990 = vpop.xlane.xlu0 %1989
  %v1991 = vsel %vm1966, %v1942, 0.0
  %1992 = vadd.xlane.f32.xlu0 %v1991
  %v1993 = vpop.xlane.xlu0 %1992
  %v1994 = vsel %vm1966, %v1943, 0.0
  %1995 = vadd.xlane.f32.xlu0 %v1994
  %v1996 = vpop.xlane.xlu0 %1995
  %v1997 = vsel %vm1966, %v1944, 0.0
  %1998 = vadd.xlane.f32.xlu0 %v1997
  %v1999 = vpop.xlane.xlu0 %1998
  %v2000 = vsel %vm1966, %v1945, 0.0
  %2001 = vadd.xlane.f32.xlu0 %v2000
  %v2002 = vpop.xlane.xlu0 %2001
  %v2003 = vsel %vm1966, %v1946, 0.0
  %2004 = vadd.xlane.f32.xlu0 %v2003
  %v2005 = vpop.xlane.xlu0 %2004
  %v2006 = vsel %vm1966, %v1947, 0.0
  %2007 = vadd.xlane.f32.xlu0 %v2006
  %v2008 = vpop.xlane.xlu0 %2007
  %v2009 = vsel %vm1966, %v1948, 0.0
  %2010 = vadd.xlane.f32.xlu0 %v2009
  %v2011 = vpop.xlane.xlu0 %2010
  %v2012 = vsel %vm1966, %v1949, 0.0
  %2013 = vadd.xlane.f32.xlu0 %v2012
  %v2014 = vpop.xlane.xlu0 %2013
  %v2015 = vsel %vm1966, %v1950, 0.0
  %2016 = vadd.xlane.f32.xlu0 %v2015
  %v2017 = vpop.xlane.xlu0 %2016
  %v2018 = vsel %vm1966, %v1951, 0.0
  %2019 = vadd.xlane.f32.xlu0 %v2018
  %v2020 = vpop.xlane.xlu0 %2019
  %v2021 = vsel %vm1966, %v1952, 0.0
  %2022 = vadd.xlane.f32.xlu0 %v2021
  %v2023 = vpop.xlane.xlu0 %2022
  %v2024 = vsel %vm1966, %v1953, 0.0
  %2025 = vadd.xlane.f32.xlu0 %v2024
  %v2026 = vpop.xlane.xlu0 %2025
  %v2027 = vsel %vm1966, %v1954, 0.0
  %2028 = vadd.xlane.f32.xlu0 %v2027
  %v2029 = vpop.xlane.xlu0 %2028
  %v2030 = vsel %vm1966, %v1955, 0.0
  %2031 = vadd.xlane.f32.xlu0 %v2030
  %v2032 = vpop.xlane.xlu0 %2031
  %v2033 = vsel %vm1966, %v1956, 0.0
  %2034 = vadd.xlane.f32.xlu0 %v2033
  %v2035 = vpop.xlane.xlu0 %2034
  %v2036 = vsel %vm1966, %v1957, 0.0
  %2037 = vadd.xlane.f32.xlu0 %v2036
  %v2038 = vpop.xlane.xlu0 %2037
  %v2039 = vsel %vm1966, %v1958, 0.0
  %2040 = vadd.xlane.f32.xlu0 %v2039
  %v2041 = vpop.xlane.xlu0 %2040
  %v2042 = vsel %vm1966, %v1959, 0.0
  %2043 = vadd.xlane.f32.xlu0 %v2042
  %v2044 = vpop.xlane.xlu0 %2043
  %v2045 = vsel %vm1966, %v1960, 0.0
  %2046 = vadd.xlane.f32.xlu0 %v2045
  %v2047 = vpop.xlane.xlu0 %2046
  %v2048 = vsel %vm1966, %v1961, 0.0
  %2049 = vadd.xlane.f32.xlu0 %v2048
  %v2050 = vpop.xlane.xlu0 %2049
  %v2051 = vsel %vm1966, %v1962, 0.0
  %2052 = vadd.xlane.f32.xlu0 %v2051
  %v2053 = vpop.xlane.xlu0 %2052
  %v2054 = vsel %vm1966, %v1963, 0.0
  %2055 = vadd.xlane.f32.xlu0 %v2054
  %v2056 = vpop.xlane.xlu0 %2055
  %v2057 = vsel %vm1966, %v1964, 0.0
  %2058 = vadd.xlane.f32.xlu0 %v2057
  %v2059 = vpop.xlane.xlu0 %2058
  %v2060 = vsel %vm1966, %v1965, 0.0
  %2061 = vadd.xlane.f32.xlu0 %v2060
  %v2062 = vpop.xlane.xlu0 %2061
  %v2063 = vadd.f32 %v1833, %v1969
  %v2064 = vadd.f32 %v1836, %v1972
  %v2065 = vadd.f32 %v1839, %v1975
  %v2066 = vadd.f32 %v1842, %v1978
  %v2067 = vadd.f32 %v1845, %v1981
  %v2068 = vadd.f32 %v1848, %v1984
  %v2069 = vadd.f32 %v1851, %v1987
  %v2070 = vadd.f32 %v1854, %v1990
  %v2071 = vadd.f32 %v1857, %v1993
  %v2072 = vadd.f32 %v1860, %v1996
  %v2073 = vadd.f32 %v1863, %v1999
  %v2074 = vadd.f32 %v1866, %v2002
  %v2075 = vadd.f32 %v1869, %v2005
  %v2076 = vadd.f32 %v1872, %v2008
  %v2077 = vadd.f32 %v1875, %v2011
  %v2078 = vadd.f32 %v1878, %v2014
  %v2079 = vadd.f32 %v1881, %v2017
  %v2080 = vadd.f32 %v1884, %v2020
  %v2081 = vadd.f32 %v1887, %v2023
  %v2082 = vadd.f32 %v1890, %v2026
  %v2083 = vadd.f32 %v1893, %v2029
  %v2084 = vadd.f32 %v1896, %v2032
  %v2085 = vadd.f32 %v1899, %v2035
  %v2086 = vadd.f32 %v1902, %v2038
  %v2087 = vadd.f32 %v1905, %v2041
  %v2088 = vadd.f32 %v1908, %v2044
  %v2089 = vadd.f32 %v1911, %v2047
  %v2090 = vadd.f32 %v1914, %v2050
  %v2091 = vadd.f32 %v1917, %v2053
  %v2092 = vadd.f32 %v1920, %v2056
  %v2093 = vadd.f32 %v1923, %v2059
  %v2094 = vadd.f32 %v1926, %v2062
  %v2095 = vld [vmem:[#allocation2] sm:$0x1]
  %v2097 = vlaneseq
  %v2098 = vshrl.u32 %v2097, 7
  %v2099 = vsub.s32 0, %v2098
  %v2100 = vrot.slane %v2095, %v2099
  %v2102 = vadd.f32 %v2063, %v2100
  %v2103 = vadd.f32 %v2064, %v2100
  %v2104 = vadd.f32 %v2065, %v2100
  %v2105 = vadd.f32 %v2066, %v2100
  %v2106 = vadd.f32 %v2067, %v2100
  %v2107 = vadd.f32 %v2068, %v2100
  %v2108 = vadd.f32 %v2069, %v2100
  %v2109 = vadd.f32 %v2070, %v2100
  %v2110 = vadd.f32 %v2071, %v2100
  %v2111 = vadd.f32 %v2072, %v2100
  %v2112 = vadd.f32 %v2073, %v2100
  %v2113 = vadd.f32 %v2074, %v2100
  %v2114 = vadd.f32 %v2075, %v2100
  %v2115 = vadd.f32 %v2076, %v2100
  %v2116 = vadd.f32 %v2077, %v2100
  %v2117 = vadd.f32 %v2078, %v2100
  %v2118 = vadd.f32 %v2079, %v2100
  %v2119 = vadd.f32 %v2080, %v2100
  %v2120 = vadd.f32 %v2081, %v2100
  %v2121 = vadd.f32 %v2082, %v2100
  %v2122 = vadd.f32 %v2083, %v2100
  %v2123 = vadd.f32 %v2084, %v2100
  %v2124 = vadd.f32 %v2085, %v2100
  %v2125 = vadd.f32 %v2086, %v2100
  %v2126 = vadd.f32 %v2087, %v2100
  %v2127 = vadd.f32 %v2088, %v2100
  %v2128 = vadd.f32 %v2089, %v2100
  %v2129 = vadd.f32 %v2090, %v2100
  %v2130 = vadd.f32 %v2091, %v2100
  %v2131 = vadd.f32 %v2092, %v2100
  %v2132 = vadd.f32 %v2093, %v2100
  %v2133 = vadd.f32 %v2094, %v2100
  %v2134 = vxor.u32 %v2102, 2147483648
  %v2135 = vxor.u32 %v2103, 2147483648
  %v2136 = vxor.u32 %v2104, 2147483648
  %v2137 = vxor.u32 %v2105, 2147483648
  %v2138 = vxor.u32 %v2106, 2147483648
  %v2139 = vxor.u32 %v2107, 2147483648
  %v2140 = vxor.u32 %v2108, 2147483648
  %v2141 = vxor.u32 %v2109, 2147483648
  %v2142 = vxor.u32 %v2110, 2147483648
  %v2143 = vxor.u32 %v2111, 2147483648
  %v2144 = vxor.u32 %v2112, 2147483648
  %v2145 = vxor.u32 %v2113, 2147483648
  %v2146 = vxor.u32 %v2114, 2147483648
  %v2147 = vxor.u32 %v2115, 2147483648
  %v2148 = vxor.u32 %v2116, 2147483648
  %v2149 = vxor.u32 %v2117, 2147483648
  %v2150 = vxor.u32 %v2118, 2147483648
  %v2151 = vxor.u32 %v2119, 2147483648
  %v2152 = vxor.u32 %v2120, 2147483648
  %v2153 = vxor.u32 %v2121, 2147483648
  %v2154 = vxor.u32 %v2122, 2147483648
  %v2155 = vxor.u32 %v2123, 2147483648
  %v2156 = vxor.u32 %v2124, 2147483648
  %v2157 = vxor.u32 %v2125, 2147483648
  %v2158 = vxor.u32 %v2126, 2147483648
  %v2159 = vxor.u32 %v2127, 2147483648
  %v2160 = vxor.u32 %v2128, 2147483648
  %v2161 = vxor.u32 %v2129, 2147483648
  %v2162 = vxor.u32 %v2130, 2147483648
  %v2163 = vxor.u32 %v2131, 2147483648
  %v2164 = vxor.u32 %v2132, 2147483648
  %v2165 = vxor.u32 %v2133, 2147483648
  %v2166 = vmul.f32 %v2134, 1.442695
  %v2167 = vpow.pop %v2166
  %v2168 = vmul.f32 %v2135, 1.442695
  %v2169 = vpow.pop %v2168
  %v2170 = vmul.f32 %v2136, 1.442695
  %v2171 = vpow.pop %v2170
  %v2172 = vmul.f32 %v2137, 1.442695
  %v2173 = vpow.pop %v2172
  %v2174 = vmul.f32 %v2138, 1.442695
  %v2175 = vpow.pop %v2174
  %v2176 = vmul.f32 %v2139, 1.442695
  %v2177 = vpow.pop %v2176
  %v2178 = vmul.f32 %v2140, 1.442695
  %v2179 = vpow.pop %v2178
  %v2180 = vmul.f32 %v2141, 1.442695
  %v2181 = vpow.pop %v2180
  %v2182 = vmul.f32 %v2142, 1.442695
  %v2183 = vpow.pop %v2182
  %v2184 = vmul.f32 %v2143, 1.442695
  %v2185 = vpow.pop %v2184
  %v2186 = vmul.f32 %v2144, 1.442695
  %v2187 = vpow.pop %v2186
  %v2188 = vmul.f32 %v2145, 1.442695
  %v2189 = vpow.pop %v2188
  %v2190 = vmul.f32 %v2146, 1.442695
  %v2191 = vpow.pop %v2190
  %v2192 = vmul.f32 %v2147, 1.442695
  %v2193 = vpow.pop %v2192
  %v2194 = vmul.f32 %v2148, 1.442695
  %v2195 = vpow.pop %v2194
  %v2196 = vmul.f32 %v2149, 1.442695
  %v2197 = vpow.pop %v2196
  %v2198 = vmul.f32 %v2150, 1.442695
  %v2199 = vpow.pop %v2198
  %v2200 = vmul.f32 %v2151, 1.442695
  %v2201 = vpow.pop %v2200
  %v2202 = vmul.f32 %v2152, 1.442695
  %v2203 = vpow.pop %v2202
  %v2204 = vmul.f32 %v2153, 1.442695
  %v2205 = vpow.pop %v2204
  %v2206 = vmul.f32 %v2154, 1.442695
  %v2207 = vpow.pop %v2206
  %v2208 = vmul.f32 %v2155, 1.442695
  %v2209 = vpow.pop %v2208
  %v2210 = vmul.f32 %v2156, 1.442695
  %v2211 = vpow.pop %v2210
  %v2212 = vmul.f32 %v2157, 1.442695
  %v2213 = vpow.pop %v2212
  %v2214 = vmul.f32 %v2158, 1.442695
  %v2215 = vpow.pop %v2214
  %v2216 = vmul.f32 %v2159, 1.442695
  %v2217 = vpow.pop %v2216
  %v2218 = vmul.f32 %v2160, 1.442695
  %v2219 = vpow.pop %v2218
  %v2220 = vmul.f32 %v2161, 1.442695
  %v2221 = vpow.pop %v2220
  %v2222 = vmul.f32 %v2162, 1.442695
  %v2223 = vpow.pop %v2222
  %v2224 = vmul.f32 %v2163, 1.442695
  %v2225 = vpow.pop %v2224
  %v2226 = vmul.f32 %v2164, 1.442695
  %v2227 = vpow.pop %v2226
  %v2228 = vmul.f32 %v2165, 1.442695
  %v2229 = vpow.pop %v2228
  %v2230 = vadd.f32 %v2167, 1.0
  %v2231 = vadd.f32 %v2169, 1.0
  %v2232 = vadd.f32 %v2171, 1.0
  %v2233 = vadd.f32 %v2173, 1.0
  %v2234 = vadd.f32 %v2175, 1.0
  %v2235 = vadd.f32 %v2177, 1.0
  %v2236 = vadd.f32 %v2179, 1.0
  %v2237 = vadd.f32 %v2181, 1.0
  %v2238 = vadd.f32 %v2183, 1.0
  %v2239 = vadd.f32 %v2185, 1.0
  %v2240 = vadd.f32 %v2187, 1.0
  %v2241 = vadd.f32 %v2189, 1.0
  %v2242 = vadd.f32 %v2191, 1.0
  %v2243 = vadd.f32 %v2193, 1.0
  %v2244 = vadd.f32 %v2195, 1.0
  %v2245 = vadd.f32 %v2197, 1.0
  %v2246 = vadd.f32 %v2199, 1.0
  %v2247 = vadd.f32 %v2201, 1.0
  %v2248 = vadd.f32 %v2203, 1.0
  %v2249 = vadd.f32 %v2205, 1.0
  %v2250 = vadd.f32 %v2207, 1.0
  %v2251 = vadd.f32 %v2209, 1.0
  %v2252 = vadd.f32 %v2211, 1.0
  %v2253 = vadd.f32 %v2213, 1.0
  %v2254 = vadd.f32 %v2215, 1.0
  %v2255 = vadd.f32 %v2217, 1.0
  %v2256 = vadd.f32 %v2219, 1.0
  %v2257 = vadd.f32 %v2221, 1.0
  %v2258 = vadd.f32 %v2223, 1.0
  %v2259 = vadd.f32 %v2225, 1.0
  %v2260 = vadd.f32 %v2227, 1.0
  %v2261 = vadd.f32 %v2229, 1.0
  %v2262 = vrcp.pop %v2230
  %v2263 = vmul.f32 1.0, %v2262
  %v2264 = vrcp.pop %v2231
  %v2265 = vmul.f32 1.0, %v2264
  %v2266 = vrcp.pop %v2232
  %v2267 = vmul.f32 1.0, %v2266
  %v2268 = vrcp.pop %v2233
  %v2269 = vmul.f32 1.0, %v2268
  %v2270 = vrcp.pop %v2234
  %v2271 = vmul.f32 1.0, %v2270
  %v2272 = vrcp.pop %v2235
  %v2273 = vmul.f32 1.0, %v2272
  %v2274 = vrcp.pop %v2236
  %v2275 = vmul.f32 1.0, %v2274
  %v2276 = vrcp.pop %v2237
  %v2277 = vmul.f32 1.0, %v2276
  %v2278 = vrcp.pop %v2238
  %v2279 = vmul.f32 1.0, %v2278
  %v2280 = vrcp.pop %v2239
  %v2281 = vmul.f32 1.0, %v2280
  %v2282 = vrcp.pop %v2240
  %v2283 = vmul.f32 1.0, %v2282
  %v2284 = vrcp.pop %v2241
  %v2285 = vmul.f32 1.0, %v2284
  %v2286 = vrcp.pop %v2242
  %v2287 = vmul.f32 1.0, %v2286
  %v2288 = vrcp.pop %v2243
  %v2289 = vmul.f32 1.0, %v2288
  %v2290 = vrcp.pop %v2244
  %v2291 = vmul.f32 1.0, %v2290
  %v2292 = vrcp.pop %v2245
  %v2293 = vmul.f32 1.0, %v2292
  %v2294 = vrcp.pop %v2246
  %v2295 = vmul.f32 1.0, %v2294
  %v2296 = vrcp.pop %v2247
  %v2297 = vmul.f32 1.0, %v2296
  %v2298 = vrcp.pop %v2248
  %v2299 = vmul.f32 1.0, %v2298
  %v2300 = vrcp.pop %v2249
  %v2301 = vmul.f32 1.0, %v2300
  %v2302 = vrcp.pop %v2250
  %v2303 = vmul.f32 1.0, %v2302
  %v2304 = vrcp.pop %v2251
  %v2305 = vmul.f32 1.0, %v2304
  %v2306 = vrcp.pop %v2252
  %v2307 = vmul.f32 1.0, %v2306
  %v2308 = vrcp.pop %v2253
  %v2309 = vmul.f32 1.0, %v2308
  %v2310 = vrcp.pop %v2254
  %v2311 = vmul.f32 1.0, %v2310
  %v2312 = vrcp.pop %v2255
  %v2313 = vmul.f32 1.0, %v2312
  %v2314 = vrcp.pop %v2256
  %v2315 = vmul.f32 1.0, %v2314
  %v2316 = vrcp.pop %v2257
  %v2317 = vmul.f32 1.0, %v2316
  %v2318 = vrcp.pop %v2258
  %v2319 = vmul.f32 1.0, %v2318
  %v2320 = vrcp.pop %v2259
  %v2321 = vmul.f32 1.0, %v2320
  %v2322 = vrcp.pop %v2260
  %v2323 = vmul.f32 1.0, %v2322
  %v2324 = vrcp.pop %v2261
  %v2325 = vmul.f32 1.0, %v2324
  %vm2326 = vcmask 7168
  %2327 = vst.msk [vmem:[%s14] sm:$0xff] %vm2326, %v2263
  %2328 = vst.msk [vmem:[%s14 + $0x8] sm:$0xff] %vm2326, %v2265
  %2329 = vst.msk [vmem:[%s14 + $0x10] sm:$0xff] %vm2326, %v2267
  %2330 = vst.msk [vmem:[%s14 + $0x18] sm:$0xff] %vm2326, %v2269
  %2331 = vst.msk [vmem:[%s14 + $0x20] sm:$0xff] %vm2326, %v2271
  %2332 = vst.msk [vmem:[%s14 + $0x28] sm:$0xff] %vm2326, %v2273
  %2333 = vst.msk [vmem:[%s14 + $0x30] sm:$0xff] %vm2326, %v2275
  %2334 = vst.msk [vmem:[%s14 + $0x38] sm:$0xff] %vm2326, %v2277
  %2335 = vst.msk [vmem:[%s14 + $0x40] sm:$0xff] %vm2326, %v2279
  %2336 = vst.msk [vmem:[%s14 + $0x48] sm:$0xff] %vm2326, %v2281
  %2337 = vst.msk [vmem:[%s14 + $0x50] sm:$0xff] %vm2326, %v2283
  %2338 = vst.msk [vmem:[%s14 + $0x58] sm:$0xff] %vm2326, %v2285
  %2339 = vst.msk [vmem:[%s14 + $0x60] sm:$0xff] %vm2326, %v2287
  %2340 = vst.msk [vmem:[%s14 + $0x68] sm:$0xff] %vm2326, %v2289
  %2341 = vst.msk [vmem:[%s14 + $0x70] sm:$0xff] %vm2326, %v2291
  %2342 = vst.msk [vmem:[%s14 + $0x78] sm:$0xff] %vm2326, %v2293
  %2343 = vst.msk [vmem:[%s14 + $0x80] sm:$0xff] %vm2326, %v2295
  %2344 = vst.msk [vmem:[%s14 + $0x88] sm:$0xff] %vm2326, %v2297
  %2345 = vst.msk [vmem:[%s14 + $0x90] sm:$0xff] %vm2326, %v2299
  %2346 = vst.msk [vmem:[%s14 + $0x98] sm:$0xff] %vm2326, %v2301
  %2347 = vst.msk [vmem:[%s14 + $0xa0] sm:$0xff] %vm2326, %v2303
  %2348 = vst.msk [vmem:[%s14 + $0xa8] sm:$0xff] %vm2326, %v2305
  %2349 = vst.msk [vmem:[%s14 + $0xb0] sm:$0xff] %vm2326, %v2307
  %2350 = vst.msk [vmem:[%s14 + $0xb8] sm:$0xff] %vm2326, %v2309
  %2351 = vst.msk [vmem:[%s14 + $0xc0] sm:$0xff] %vm2326, %v2311
  %2352 = vst.msk [vmem:[%s14 + $0xc8] sm:$0xff] %vm2326, %v2313
  %2353 = vst.msk [vmem:[%s14 + $0xd0] sm:$0xff] %vm2326, %v2315
  %2354 = vst.msk [vmem:[%s14 + $0xd8] sm:$0xff] %vm2326, %v2317
  %2355 = vst.msk [vmem:[%s14 + $0xe0] sm:$0xff] %vm2326, %v2319
  %2356 = vst.msk [vmem:[%s14 + $0xe8] sm:$0xff] %vm2326, %v2321
  %2357 = vst.msk [vmem:[%s14 + $0xf0] sm:$0xff] %vm2326, %v2323
  %2358 = vst.msk [vmem:[%s14 + $0xf8] sm:$0xff] %vm2326, %v2325
  // Predicated region
  $region58: #{ncf_forward.1} parent=0 // pred_check
    _
  $region59: #{ncf_forward.1} parent=0 // pred_check_branch
    %2360 = sbr.rel (0) target = $region61
  $region60: #{ncf_forward.1} parent=0 // pred_region
    _
  $region61: #{ncf_forward.1} parent=0 // pred_fallthru
    _
  // Predicated region
  $region62: #{ncf_forward.1} parent=0 // pred_check
    _
  $region63: #{ncf_forward.1} parent=0 // pred_check_branch
    %2362 = sbr.rel (0) target = $region65
  $region64: #{ncf_forward.1} parent=0 // pred_region
    _
  $region65: #{ncf_forward.1} parent=0 // pred_fallthru
    _

</llo_original>
